<compile_context>
chip_gen: v7x
topology: tpu7x:2x2x1
jax: 0.10.0
libtpu: 0.0.40
codegen_flags: <defaults>
</compile_context>

<pallas_src>
import functools

import jax
import jax.numpy as jnp
from jax.experimental import pallas as pl
from jax.experimental.pallas import tpu as pltpu

EPS = 1e-5  # nn.BatchNorm2d default


# ---------------------------------------------------------------------------
# In-kernel helpers (everything operates on lane-dense (rows, W*C) arrays)
# ---------------------------------------------------------------------------
def _cyclic_channel_allreduce(row, C, WC):
    """row: (1, W*C).  Per-channel totals replicated across the W lane-blocks
    via log2(W) roll+add steps (requires W to be a power of two)."""
    shift = C
    while shift < WC:
        row = row + pltpu.roll(row, shift, axis=1)
        shift *= 2
    return row


def _bn_act(y, gamma_d, beta_d, M, C, relu6):
    """Exact two-pass training-mode BatchNorm (+ optional ReLU6) on a
    lane-dense (rows, W*C) activation.  gamma_d / beta_d: (1, W*C) pre-tiled."""
    WC = y.shape[1]
    inv_m = jnp.float32(1.0 / M)
    mean = _cyclic_channel_allreduce(
        jnp.sum(y, axis=0, keepdims=True), C, WC) * inv_m
    yc = y - mean
    var = _cyclic_channel_allreduce(
        jnp.sum(yc * yc, axis=0, keepdims=True), C, WC) * inv_m
    scale = jax.lax.rsqrt(var + EPS) * gamma_d          # rsqrt -> EUP slot
    out = yc * scale + beta_d
    if relu6:
        out = jnp.minimum(jnp.maximum(out, 0.0), 6.0)
    return out


def _pw_conv_lane_mac(x, pats, C, WC):
    """1x1 conv as an unrolled VPU MAC over XLU lane shifts.
    x: (rows, W*C); pats: (2C-1, W*C), pats[C-1+s][w*C+co] = w[co+s, co]
    (zero where co+s is outside [0, C), which also kills any roll wrap)."""
    y = x * pats[C - 1:C, :]                            # s = 0 (diagonal) term
    for s in range(1, C):
        y = y + pltpu.roll(x, WC - s, axis=1) * pats[C - 1 + s:C + s, :]
        y = y + pltpu.roll(x, s, axis=1) * pats[C - 1 - s:C - s, :]
    return y


# ---------------------------------------------------------------------------
# Fused kernel: pw1+BN+ReLU6 -> dw3x3+BN -> pw3+BN+ReLU6 (right branch only)
# ---------------------------------------------------------------------------
def _shuffle_unit_kernel(xr_ref, hmask_ref, p1_ref, pdw_ref, p3_ref,
                         g1_ref, b1_ref, g2_ref, b2_ref, g3_ref, b3_ref,
                         o_ref, *, W, C):
    NH, WC = xr_ref.shape
    M = NH * W                                          # N*H*W per channel

    xr = xr_ref[...]

    # ---- stage 1: 1x1 conv + BN + ReLU6 ------------------------------------
    y1 = _pw_conv_lane_mac(xr, p1_ref[...], C, WC)
    y1 = _bn_act(y1, g1_ref[...], b1_ref[...], M, C, relu6=True)

    # ---- stage 2: 3x3 depthwise conv (pad=1) + BN --------------------------
    # H taps: shift rows by +/-1 (zero row shifted in) and zero the taps that
    # cross an image boundary (precomputed per-row masks).
    zrow = jnp.zeros((1, WC), jnp.float32)
    m_up = hmask_ref[:, 0:1]                            # valid to read h+1
    m_dn = hmask_ref[:, 1:2]                            # valid to read h-1
    y_up = jnp.concatenate([y1[1:, :], zrow], axis=0) * m_up
    y_dn = jnp.concatenate([zrow, y1[:-1, :]], axis=0) * m_dn
    # W taps: lane rolls by +/-C; the W-edge (padding) zeroing is folded into
    # the per-lane weight patterns, so wrapped lanes get multiplied by zero.
    pdw = pdw_ref[...]
    acc = None
    for i_dh, src in enumerate((y_dn, y1, y_up)):       # dh = -1, 0, +1
        for i_dw, dw in enumerate((-1, 0, 1)):
            pat = pdw[3 * i_dh + i_dw:3 * i_dh + i_dw + 1, :]
            t = src if dw == 0 else pltpu.roll(src, (-dw * C) % WC, axis=1)
            t = t * pat
            acc = t if acc is None else acc + t        # first tap inits acc
    y2 = _bn_act(acc, g2_ref[...], b2_ref[...], M, C, relu6=False)

    # ---- stage 3: 1x1 conv + BN + ReLU6 ------------------------------------
    y3 = _pw_conv_lane_mac(y2, p3_ref[...], C, WC)
    y3 = _bn_act(y3, g3_ref[...], b3_ref[...], M, C, relu6=True)

    o_ref[...] = y3                                     # one unmasked store


# ---------------------------------------------------------------------------
# Wrapper-side lane-pattern builders (tiny, fused by XLA)
# ---------------------------------------------------------------------------
def _pw_lane_patterns(w, C, W):
    """w: (C_in, C_out) with C_in == C_out == C.  Returns (2C-1, W*C):
    row (s + C - 1) holds w[co+s, co] at lane w_pos*C + co (0 if out of range)."""
    co = jnp.arange(C)
    rows = []
    for s in range(-(C - 1), C):
        ci = co + s
        valid = (ci >= 0) & (ci < C)
        vals = jnp.where(valid, w[jnp.clip(ci, 0, C - 1), co], 0.0)
        rows.append(jnp.tile(vals, W))
    return jnp.stack(rows, axis=0)


def _dw_lane_patterns(k, C, W):
    """k: (3, 3, C) depthwise taps.  Returns (9, W*C); row 3*(dh+1)+(dw+1)
    with the W-edge (padding) zeroing folded in."""
    wpos = jnp.arange(W)
    rows = []
    for dh in (-1, 0, 1):
        for dw in (-1, 0, 1):
            ok = ((wpos + dw >= 0) & (wpos + dw < W)).astype(k.dtype)
            rows.append((ok[:, None] * k[dh + 1, dw + 1][None, :]).reshape(W * C))
    return jnp.stack(rows, axis=0)


_VMEM = pl.BlockSpec(memory_space=pltpu.MemorySpace.VMEM)


@functools.partial(jax.jit, static_argnames=("left_in", "groups"))
def shuffle_unit_forward(x_nchw, w1, w2, w3, g1, b1, g2, b2, g3, b3,
                         *, left_in, groups):
    N, Cin, H, W = x_nchw.shape
    C = w1.shape[1]                                     # right-branch channels
    assert Cin - left_in == C, "lane-dense path needs right_in == right_out"
    assert W & (W - 1) == 0, "cyclic BN reduce needs power-of-two W"
    # TODO(synk): general-W / right_in != right_out fallback path.
    NH, WC = N * H, W * C
    Cout = left_in + C

    # Right-branch input in lane-dense layout: row = n*H + h, lane = w*C + c.
    xr = jnp.transpose(x_nchw[:, left_in:], (0, 2, 3, 1)).reshape(NH, WC)

    # Per-row masks for the depthwise H taps (1 iff the tap stays in-image).
    h_of_row = jnp.arange(NH, dtype=jnp.int32) % H
    hmask = jnp.stack([h_of_row < H - 1, h_of_row > 0],
                      axis=1).astype(jnp.float32)       # (NH, 2)

    # Pre-tiled lane patterns for the convs and the BN affine parameters.
    p1 = _pw_lane_patterns(w1, C, W)
    p3 = _pw_lane_patterns(w3, C, W)
    pdw = _dw_lane_patterns(w2, C, W)
    g1d, b1d, g2d, b2d, g3d, b3d = (
        jnp.tile(v.reshape(1, C), (1, W)) for v in (g1, b1, g2, b2, g3, b3))

    # VMEM limit from the actual footprint (8x head-room, <= 48 MiB for v7x).
    footprint = 4 * WC * (2 * NH + 2 * (2 * C - 1) + 9 + 6) + 4 * NH * 2
    vmem_limit = int(min(max(8 * footprint, 4 << 20), 48 << 20))

    kern = functools.partial(_shuffle_unit_kernel, W=W, C=C)
    y3 = pl.pallas_call(
        kern,
        out_shape=jax.ShapeDtypeStruct((NH, WC), jnp.float32),
        in_specs=[_VMEM] * 11,
        out_specs=_VMEM,
        compiler_params=pltpu.CompilerParams(vmem_limit_bytes=vmem_limit),
    )(xr, hmask, p1, pdw, p3, g1d, b1d, g2d, b2d, g3d, b3d)

    # concat(left, right) + channel_shuffle + NCHW as a single channel gather;
    # the untouched left channels never went through the kernel.
    r_nchw = jnp.transpose(y3.reshape(N, H, W, C), (0, 3, 1, 2))
    full = jnp.concatenate([x_nchw[:, :left_in], r_nchw], axis=1)
    cpg = Cout // groups
    perm = jnp.array([(m % groups) * cpg + (m // groups) for m in range(Cout)],
                     dtype=jnp.int32)
    return jnp.take(full, perm, axis=1)


class ShuffleUnitPallas:
    def __init__(self, in_channel, out_channel, stride, split_ratio, groups, key):
        assert stride == 1, "only the stride == 1 branch is implemented"
        # TODO(synk): stride != 1 branch (left/right downsampling paths).
        self.groups = groups
        self.left_in = int(split_ratio * in_channel)
        right_in = in_channel - self.left_in
        right_out = out_channel - self.left_in
        assert right_in == right_out, "lane-dense kernel assumes right_in == right_out"
        k1, k2, k3, k4 = jax.random.split(key, 4)
        # PyTorch shapes: rconv1 (ro,ri,1,1); rconv2 depthwise (ro,1,3,3);
        # rconv3 (ro,ro,1,1) — stored here in matmul / NHWC-friendly layouts.
        self.w1 = jax.random.normal(k1, (right_in, right_out), jnp.float32) * 0.1
        self.w2 = jax.random.normal(k2, (3, 3, right_out), jnp.float32) * 0.1
        self.w3 = jax.random.normal(k3, (right_out, right_out), jnp.float32) * 0.1
        gb = jax.random.normal(k4, (6, right_out), jnp.float32) * 0.1
        self.g1, self.g2, self.g3 = 1.0 + gb[0], 1.0 + gb[1], 1.0 + gb[2]
        self.b1, self.b2, self.b3 = gb[3], gb[4], gb[5]

    def __call__(self, x_nchw):
        return shuffle_unit_forward(
            x_nchw, self.w1, self.w2, self.w3,
            self.g1, self.b1, self.g2, self.b2, self.g3, self.b3,
            left_in=self.left_in, groups=self.groups)


# ---------------------------------------------------------------------------
# Pure-jnp reference (canonical two-pass BN) for correctness checking
# ---------------------------------------------------------------------------
def _pw_ref(x2d, w, g, b, relu6):
    y = x2d @ w
    mean = y.mean(0, keepdims=True)
    var = jnp.square(y - mean).mean(0, keepdims=True)
    out = (y - mean) * jax.lax.rsqrt(var + EPS) * g[None, :] + b[None, :]
    return jnp.clip(out, 0.0, 6.0) if relu6 else out


def _dw_ref(x, w, g, b):
    N, H, W, C = x.shape
    xp = jnp.pad(x, ((0, 0), (1, 1), (1, 1), (0, 0)))
    acc = jnp.zeros_like(x)
    for dh in range(3):
        for dw in range(3):
            acc = acc + xp[:, dh:dh + H, dw:dw + W, :] * w[dh, dw][None, None, None, :]
    y = acc.reshape(-1, C)
    mean = y.mean(0, keepdims=True)
    var = jnp.square(y - mean).mean(0, keepdims=True)
    out = (y - mean) * jax.lax.rsqrt(var + EPS) * g[None, :] + b[None, :]
    return out.reshape(N, H, W, C)


def reference_forward(unit, x_nchw):
    x = jnp.transpose(x_nchw, (0, 2, 3, 1))
    N, H, W, _ = x.shape
    M = N * H * W
    l_x = x[..., :unit.left_in]
    r_x = x[..., unit.left_in:]
    r = _pw_ref(r_x.reshape(M, -1), unit.w1, unit.g1, unit.b1, True).reshape(N, H, W, -1)
    r = _dw_ref(r, unit.w2, unit.g2, unit.b2)
    r = _pw_ref(r.reshape(M, -1), unit.w3, unit.g3, unit.b3, True).reshape(N, H, W, -1)
    x_out = jnp.concatenate([l_x, r], axis=-1)
    Cout = x_out.shape[-1]
    g = unit.groups
    xs = x_out.reshape(N, H, W, g, Cout // g).transpose(0, 1, 2, 4, 3).reshape(N, H, W, Cout)
    return jnp.transpose(xs, (0, 3, 1, 2))


# ---------------------------------------------------------------------------
if __name__ == "__main__":
    key = jax.random.PRNGKey(0)
    kx, kp = jax.random.split(key)

    # in_channel = out_channel = 16, stride = 1, split_ratio = 0.5, groups = 2
    x = jax.random.normal(kx, (2, 16, 16, 16), jnp.float32)   # NCHW
    unit = ShuffleUnitPallas(in_channel=16, out_channel=16, stride=1,
                             split_ratio=0.5, groups=2, key=kp)

    out = jax.block_until_ready(unit(x))
    ref = jax.block_until_ready(reference_forward(unit, x))

    assert out.shape == (2, 16, 16, 16)
    assert jnp.allclose(out, ref, atol=2e-4, rtol=1e-4), "Pallas output mismatch vs reference"

    print("KERNEL_OK")
</pallas_src>

<mosaic_0001>
module attributes {stable_mosaic.version = 11 : i64} {
  func.func @_shuffle_unit_kernel(%arg0: memref<32x128xf32, #tpu.memory_space<vmem>>, %arg1: memref<32x2xf32, #tpu.memory_space<vmem>>, %arg2: memref<15x128xf32, #tpu.memory_space<vmem>>, %arg3: memref<9x128xf32, #tpu.memory_space<vmem>>, %arg4: memref<15x128xf32, #tpu.memory_space<vmem>>, %arg5: memref<1x128xf32, #tpu.memory_space<vmem>>, %arg6: memref<1x128xf32, #tpu.memory_space<vmem>>, %arg7: memref<1x128xf32, #tpu.memory_space<vmem>>, %arg8: memref<1x128xf32, #tpu.memory_space<vmem>>, %arg9: memref<1x128xf32, #tpu.memory_space<vmem>>, %arg10: memref<1x128xf32, #tpu.memory_space<vmem>>, %arg11: memref<32x128xf32, #tpu.memory_space<vmem>>) attributes {dimension_semantics = [], scalar_prefetch = 0 : i64, scratch_operands = 0 : i64, tpu.core_type = #tpu.core_type<tc>} {
    %c0 = arith.constant 0 : index
    %c0_0 = arith.constant 0 : index
    %0 = vector.load %arg0[%c0, %c0_0] : memref<32x128xf32, #tpu.memory_space<vmem>>, vector<32x128xf32>
    %c0_1 = arith.constant 0 : index
    %c0_2 = arith.constant 0 : index
    %1 = vector.load %arg2[%c0_1, %c0_2] : memref<15x128xf32, #tpu.memory_space<vmem>>, vector<15x128xf32>
    %2 = vector.extract_strided_slice %1 {offsets = [7, 0], sizes = [1, 128], strides = [1, 1]} : vector<15x128xf32> to vector<1x128xf32>
    %3 = vector.broadcast %2 : vector<1x128xf32> to vector<32x128xf32>
    %4 = arith.mulf %0, %3 : vector<32x128xf32>
    %c127_i32 = arith.constant 127 : i32
    %5 = tpu.dynamic_rotate %0 by %c127_i32 dim 1 : vector<32x128xf32>, i32 -> vector<32x128xf32>
    %6 = vector.extract_strided_slice %1 {offsets = [8, 0], sizes = [1, 128], strides = [1, 1]} : vector<15x128xf32> to vector<1x128xf32>
    %7 = vector.broadcast %6 : vector<1x128xf32> to vector<32x128xf32>
    %8 = arith.mulf %5, %7 : vector<32x128xf32>
    %9 = arith.addf %4, %8 : vector<32x128xf32>
    %c1_i32 = arith.constant 1 : i32
    %10 = tpu.dynamic_rotate %0 by %c1_i32 dim 1 : vector<32x128xf32>, i32 -> vector<32x128xf32>
    %11 = vector.extract_strided_slice %1 {offsets = [6, 0], sizes = [1, 128], strides = [1, 1]} : vector<15x128xf32> to vector<1x128xf32>
    %12 = vector.broadcast %11 : vector<1x128xf32> to vector<32x128xf32>
    %13 = arith.mulf %10, %12 : vector<32x128xf32>
    %14 = arith.addf %9, %13 : vector<32x128xf32>
    %c126_i32 = arith.constant 126 : i32
    %15 = tpu.dynamic_rotate %0 by %c126_i32 dim 1 : vector<32x128xf32>, i32 -> vector<32x128xf32>
    %16 = vector.extract_strided_slice %1 {offsets = [9, 0], sizes = [1, 128], strides = [1, 1]} : vector<15x128xf32> to vector<1x128xf32>
    %17 = vector.broadcast %16 : vector<1x128xf32> to vector<32x128xf32>
    %18 = arith.mulf %15, %17 : vector<32x128xf32>
    %19 = arith.addf %14, %18 : vector<32x128xf32>
    %c2_i32 = arith.constant 2 : i32
    %20 = tpu.dynamic_rotate %0 by %c2_i32 dim 1 : vector<32x128xf32>, i32 -> vector<32x128xf32>
    %21 = vector.extract_strided_slice %1 {offsets = [5, 0], sizes = [1, 128], strides = [1, 1]} : vector<15x128xf32> to vector<1x128xf32>
    %22 = vector.broadcast %21 : vector<1x128xf32> to vector<32x128xf32>
    %23 = arith.mulf %20, %22 : vector<32x128xf32>
    %24 = arith.addf %19, %23 : vector<32x128xf32>
    %c125_i32 = arith.constant 125 : i32
    %25 = tpu.dynamic_rotate %0 by %c125_i32 dim 1 : vector<32x128xf32>, i32 -> vector<32x128xf32>
    %26 = vector.extract_strided_slice %1 {offsets = [10, 0], sizes = [1, 128], strides = [1, 1]} : vector<15x128xf32> to vector<1x128xf32>
    %27 = vector.broadcast %26 : vector<1x128xf32> to vector<32x128xf32>
    %28 = arith.mulf %25, %27 : vector<32x128xf32>
    %29 = arith.addf %24, %28 : vector<32x128xf32>
    %c3_i32 = arith.constant 3 : i32
    %30 = tpu.dynamic_rotate %0 by %c3_i32 dim 1 : vector<32x128xf32>, i32 -> vector<32x128xf32>
    %31 = vector.extract_strided_slice %1 {offsets = [4, 0], sizes = [1, 128], strides = [1, 1]} : vector<15x128xf32> to vector<1x128xf32>
    %32 = vector.broadcast %31 : vector<1x128xf32> to vector<32x128xf32>
    %33 = arith.mulf %30, %32 : vector<32x128xf32>
    %34 = arith.addf %29, %33 : vector<32x128xf32>
    %c124_i32 = arith.constant 124 : i32
    %35 = tpu.dynamic_rotate %0 by %c124_i32 dim 1 : vector<32x128xf32>, i32 -> vector<32x128xf32>
    %36 = vector.extract_strided_slice %1 {offsets = [11, 0], sizes = [1, 128], strides = [1, 1]} : vector<15x128xf32> to vector<1x128xf32>
    %37 = vector.broadcast %36 : vector<1x128xf32> to vector<32x128xf32>
    %38 = arith.mulf %35, %37 : vector<32x128xf32>
    %39 = arith.addf %34, %38 : vector<32x128xf32>
    %c4_i32 = arith.constant 4 : i32
    %40 = tpu.dynamic_rotate %0 by %c4_i32 dim 1 : vector<32x128xf32>, i32 -> vector<32x128xf32>
    %41 = vector.extract_strided_slice %1 {offsets = [3, 0], sizes = [1, 128], strides = [1, 1]} : vector<15x128xf32> to vector<1x128xf32>
    %42 = vector.broadcast %41 : vector<1x128xf32> to vector<32x128xf32>
    %43 = arith.mulf %40, %42 : vector<32x128xf32>
    %44 = arith.addf %39, %43 : vector<32x128xf32>
    %c123_i32 = arith.constant 123 : i32
    %45 = tpu.dynamic_rotate %0 by %c123_i32 dim 1 : vector<32x128xf32>, i32 -> vector<32x128xf32>
    %46 = vector.extract_strided_slice %1 {offsets = [12, 0], sizes = [1, 128], strides = [1, 1]} : vector<15x128xf32> to vector<1x128xf32>
    %47 = vector.broadcast %46 : vector<1x128xf32> to vector<32x128xf32>
    %48 = arith.mulf %45, %47 : vector<32x128xf32>
    %49 = arith.addf %44, %48 : vector<32x128xf32>
    %c5_i32 = arith.constant 5 : i32
    %50 = tpu.dynamic_rotate %0 by %c5_i32 dim 1 : vector<32x128xf32>, i32 -> vector<32x128xf32>
    %51 = vector.extract_strided_slice %1 {offsets = [2, 0], sizes = [1, 128], strides = [1, 1]} : vector<15x128xf32> to vector<1x128xf32>
    %52 = vector.broadcast %51 : vector<1x128xf32> to vector<32x128xf32>
    %53 = arith.mulf %50, %52 : vector<32x128xf32>
    %54 = arith.addf %49, %53 : vector<32x128xf32>
    %c122_i32 = arith.constant 122 : i32
    %55 = tpu.dynamic_rotate %0 by %c122_i32 dim 1 : vector<32x128xf32>, i32 -> vector<32x128xf32>
    %56 = vector.extract_strided_slice %1 {offsets = [13, 0], sizes = [1, 128], strides = [1, 1]} : vector<15x128xf32> to vector<1x128xf32>
    %57 = vector.broadcast %56 : vector<1x128xf32> to vector<32x128xf32>
    %58 = arith.mulf %55, %57 : vector<32x128xf32>
    %59 = arith.addf %54, %58 : vector<32x128xf32>
    %c6_i32 = arith.constant 6 : i32
    %60 = tpu.dynamic_rotate %0 by %c6_i32 dim 1 : vector<32x128xf32>, i32 -> vector<32x128xf32>
    %61 = vector.extract_strided_slice %1 {offsets = [1, 0], sizes = [1, 128], strides = [1, 1]} : vector<15x128xf32> to vector<1x128xf32>
    %62 = vector.broadcast %61 : vector<1x128xf32> to vector<32x128xf32>
    %63 = arith.mulf %60, %62 : vector<32x128xf32>
    %64 = arith.addf %59, %63 : vector<32x128xf32>
    %c121_i32 = arith.constant 121 : i32
    %65 = tpu.dynamic_rotate %0 by %c121_i32 dim 1 : vector<32x128xf32>, i32 -> vector<32x128xf32>
    %66 = vector.extract_strided_slice %1 {offsets = [14, 0], sizes = [1, 128], strides = [1, 1]} : vector<15x128xf32> to vector<1x128xf32>
    %67 = vector.broadcast %66 : vector<1x128xf32> to vector<32x128xf32>
    %68 = arith.mulf %65, %67 : vector<32x128xf32>
    %69 = arith.addf %64, %68 : vector<32x128xf32>
    %c7_i32 = arith.constant 7 : i32
    %70 = tpu.dynamic_rotate %0 by %c7_i32 dim 1 : vector<32x128xf32>, i32 -> vector<32x128xf32>
    %71 = vector.extract_strided_slice %1 {offsets = [0, 0], sizes = [1, 128], strides = [1, 1]} : vector<15x128xf32> to vector<1x128xf32>
    %72 = vector.broadcast %71 : vector<1x128xf32> to vector<32x128xf32>
    %73 = arith.mulf %70, %72 : vector<32x128xf32>
    %74 = arith.addf %69, %73 : vector<32x128xf32>
    %c0_3 = arith.constant 0 : index
    %c0_4 = arith.constant 0 : index
    %75 = vector.load %arg5[%c0_3, %c0_4] : memref<1x128xf32, #tpu.memory_space<vmem>>, vector<1x128xf32>
    %c0_5 = arith.constant 0 : index
    %c0_6 = arith.constant 0 : index
    %76 = vector.load %arg6[%c0_5, %c0_6] : memref<1x128xf32, #tpu.memory_space<vmem>>, vector<1x128xf32>
    %cst = arith.constant dense<0.000000e+00> : vector<128xf32>
    %77 = vector.multi_reduction <add>, %74, %cst [0] : vector<32x128xf32> to vector<128xf32>
    %78 = vector.shape_cast %77 : vector<128xf32> to vector<1x128xf32>
    %c8_i32 = arith.constant 8 : i32
    %79 = tpu.dynamic_rotate %78 by %c8_i32 dim 1 : vector<1x128xf32>, i32 -> vector<1x128xf32>
    %80 = arith.addf %78, %79 : vector<1x128xf32>
    %c16_i32 = arith.constant 16 : i32
    %81 = tpu.dynamic_rotate %80 by %c16_i32 dim 1 : vector<1x128xf32>, i32 -> vector<1x128xf32>
    %82 = arith.addf %80, %81 : vector<1x128xf32>
    %c32_i32 = arith.constant 32 : i32
    %83 = tpu.dynamic_rotate %82 by %c32_i32 dim 1 : vector<1x128xf32>, i32 -> vector<1x128xf32>
    %84 = arith.addf %82, %83 : vector<1x128xf32>
    %c64_i32 = arith.constant 64 : i32
    %85 = tpu.dynamic_rotate %84 by %c64_i32 dim 1 : vector<1x128xf32>, i32 -> vector<1x128xf32>
    %86 = arith.addf %84, %85 : vector<1x128xf32>
    %cst_7 = arith.constant 0.001953125 : f32
    %87 = vector.broadcast %cst_7 : f32 to vector<1x128xf32>
    %88 = arith.mulf %86, %87 : vector<1x128xf32>
    %89 = vector.broadcast %88 : vector<1x128xf32> to vector<32x128xf32>
    %90 = arith.subf %74, %89 : vector<32x128xf32>
    %91 = arith.mulf %90, %90 : vector<32x128xf32>
    %cst_8 = arith.constant dense<0.000000e+00> : vector<128xf32>
    %92 = vector.multi_reduction <add>, %91, %cst_8 [0] : vector<32x128xf32> to vector<128xf32>
    %93 = vector.shape_cast %92 : vector<128xf32> to vector<1x128xf32>
    %c8_i32_9 = arith.constant 8 : i32
    %94 = tpu.dynamic_rotate %93 by %c8_i32_9 dim 1 : vector<1x128xf32>, i32 -> vector<1x128xf32>
    %95 = arith.addf %93, %94 : vector<1x128xf32>
    %c16_i32_10 = arith.constant 16 : i32
    %96 = tpu.dynamic_rotate %95 by %c16_i32_10 dim 1 : vector<1x128xf32>, i32 -> vector<1x128xf32>
    %97 = arith.addf %95, %96 : vector<1x128xf32>
    %c32_i32_11 = arith.constant 32 : i32
    %98 = tpu.dynamic_rotate %97 by %c32_i32_11 dim 1 : vector<1x128xf32>, i32 -> vector<1x128xf32>
    %99 = arith.addf %97, %98 : vector<1x128xf32>
    %c64_i32_12 = arith.constant 64 : i32
    %100 = tpu.dynamic_rotate %99 by %c64_i32_12 dim 1 : vector<1x128xf32>, i32 -> vector<1x128xf32>
    %101 = arith.addf %99, %100 : vector<1x128xf32>
    %cst_13 = arith.constant 0.001953125 : f32
    %102 = vector.broadcast %cst_13 : f32 to vector<1x128xf32>
    %103 = arith.mulf %101, %102 : vector<1x128xf32>
    %cst_14 = arith.constant 9.99999974E-6 : f32
    %104 = vector.broadcast %cst_14 : f32 to vector<1x128xf32>
    %105 = arith.addf %103, %104 : vector<1x128xf32>
    %106 = math.rsqrt %105 : vector<1x128xf32>
    %107 = arith.mulf %106, %75 : vector<1x128xf32>
    %108 = vector.broadcast %107 : vector<1x128xf32> to vector<32x128xf32>
    %109 = arith.mulf %90, %108 : vector<32x128xf32>
    %110 = vector.broadcast %76 : vector<1x128xf32> to vector<32x128xf32>
    %111 = arith.addf %109, %110 : vector<32x128xf32>
    %cst_15 = arith.constant 0.000000e+00 : f32
    %112 = vector.broadcast %cst_15 : f32 to vector<32x128xf32>
    %113 = arith.maximumf %111, %112 : vector<32x128xf32>
    %cst_16 = arith.constant 6.000000e+00 : f32
    %114 = vector.broadcast %cst_16 : f32 to vector<32x128xf32>
    %115 = arith.minimumf %113, %114 : vector<32x128xf32>
    %cst_17 = arith.constant 0.000000e+00 : f32
    %116 = vector.broadcast %cst_17 : f32 to vector<1x128xf32>
    %c0_18 = arith.constant 0 : index
    %c0_19 = arith.constant 0 : index
    %117 = vector.load %arg1[%c0_18, %c0_19] : memref<32x2xf32, #tpu.memory_space<vmem>>, vector<32x1xf32>
    %c0_20 = arith.constant 0 : index
    %c1 = arith.constant 1 : index
    %118 = vector.load %arg1[%c0_20, %c1] : memref<32x2xf32, #tpu.memory_space<vmem>>, vector<32x1xf32>
    %119 = vector.extract_strided_slice %115 {offsets = [1, 0], sizes = [31, 128], strides = [1, 1]} : vector<32x128xf32> to vector<31x128xf32>
    %120 = tpu.concatenate %119, %116 in 0 : vector<31x128xf32>, vector<1x128xf32> -> vector<32x128xf32>
    %121 = vector.broadcast %117 : vector<32x1xf32> to vector<32x128xf32>
    %122 = arith.mulf %120, %121 : vector<32x128xf32>
    %123 = vector.extract_strided_slice %115 {offsets = [0, 0], sizes = [31, 128], strides = [1, 1]} : vector<32x128xf32> to vector<31x128xf32>
    %124 = tpu.concatenate %116, %123 in 0 : vector<1x128xf32>, vector<31x128xf32> -> vector<32x128xf32>
    %125 = vector.broadcast %118 : vector<32x1xf32> to vector<32x128xf32>
    %126 = arith.mulf %124, %125 : vector<32x128xf32>
    %c0_21 = arith.constant 0 : index
    %c0_22 = arith.constant 0 : index
    %127 = vector.load %arg3[%c0_21, %c0_22] : memref<9x128xf32, #tpu.memory_space<vmem>>, vector<9x128xf32>
    %128 = vector.extract_strided_slice %127 {offsets = [0, 0], sizes = [1, 128], strides = [1, 1]} : vector<9x128xf32> to vector<1x128xf32>
    %c8_i32_23 = arith.constant 8 : i32
    %129 = tpu.dynamic_rotate %126 by %c8_i32_23 dim 1 : vector<32x128xf32>, i32 -> vector<32x128xf32>
    %130 = vector.broadcast %128 : vector<1x128xf32> to vector<32x128xf32>
    %131 = arith.mulf %129, %130 : vector<32x128xf32>
    %132 = vector.extract_strided_slice %127 {offsets = [1, 0], sizes = [1, 128], strides = [1, 1]} : vector<9x128xf32> to vector<1x128xf32>
    %133 = vector.broadcast %132 : vector<1x128xf32> to vector<32x128xf32>
    %134 = arith.mulf %126, %133 : vector<32x128xf32>
    %135 = arith.addf %131, %134 : vector<32x128xf32>
    %136 = vector.extract_strided_slice %127 {offsets = [2, 0], sizes = [1, 128], strides = [1, 1]} : vector<9x128xf32> to vector<1x128xf32>
    %c120_i32 = arith.constant 120 : i32
    %137 = tpu.dynamic_rotate %126 by %c120_i32 dim 1 : vector<32x128xf32>, i32 -> vector<32x128xf32>
    %138 = vector.broadcast %136 : vector<1x128xf32> to vector<32x128xf32>
    %139 = arith.mulf %137, %138 : vector<32x128xf32>
    %140 = arith.addf %135, %139 : vector<32x128xf32>
    %141 = vector.extract_strided_slice %127 {offsets = [3, 0], sizes = [1, 128], strides = [1, 1]} : vector<9x128xf32> to vector<1x128xf32>
    %c8_i32_24 = arith.constant 8 : i32
    %142 = tpu.dynamic_rotate %115 by %c8_i32_24 dim 1 : vector<32x128xf32>, i32 -> vector<32x128xf32>
    %143 = vector.broadcast %141 : vector<1x128xf32> to vector<32x128xf32>
    %144 = arith.mulf %142, %143 : vector<32x128xf32>
    %145 = arith.addf %140, %144 : vector<32x128xf32>
    %146 = vector.extract_strided_slice %127 {offsets = [4, 0], sizes = [1, 128], strides = [1, 1]} : vector<9x128xf32> to vector<1x128xf32>
    %147 = vector.broadcast %146 : vector<1x128xf32> to vector<32x128xf32>
    %148 = arith.mulf %115, %147 : vector<32x128xf32>
    %149 = arith.addf %145, %148 : vector<32x128xf32>
    %150 = vector.extract_strided_slice %127 {offsets = [5, 0], sizes = [1, 128], strides = [1, 1]} : vector<9x128xf32> to vector<1x128xf32>
    %c120_i32_25 = arith.constant 120 : i32
    %151 = tpu.dynamic_rotate %115 by %c120_i32_25 dim 1 : vector<32x128xf32>, i32 -> vector<32x128xf32>
    %152 = vector.broadcast %150 : vector<1x128xf32> to vector<32x128xf32>
    %153 = arith.mulf %151, %152 : vector<32x128xf32>
    %154 = arith.addf %149, %153 : vector<32x128xf32>
    %155 = vector.extract_strided_slice %127 {offsets = [6, 0], sizes = [1, 128], strides = [1, 1]} : vector<9x128xf32> to vector<1x128xf32>
    %c8_i32_26 = arith.constant 8 : i32
    %156 = tpu.dynamic_rotate %122 by %c8_i32_26 dim 1 : vector<32x128xf32>, i32 -> vector<32x128xf32>
    %157 = vector.broadcast %155 : vector<1x128xf32> to vector<32x128xf32>
    %158 = arith.mulf %156, %157 : vector<32x128xf32>
    %159 = arith.addf %154, %158 : vector<32x128xf32>
    %160 = vector.extract_strided_slice %127 {offsets = [7, 0], sizes = [1, 128], strides = [1, 1]} : vector<9x128xf32> to vector<1x128xf32>
    %161 = vector.broadcast %160 : vector<1x128xf32> to vector<32x128xf32>
    %162 = arith.mulf %122, %161 : vector<32x128xf32>
    %163 = arith.addf %159, %162 : vector<32x128xf32>
    %164 = vector.extract_strided_slice %127 {offsets = [8, 0], sizes = [1, 128], strides = [1, 1]} : vector<9x128xf32> to vector<1x128xf32>
    %c120_i32_27 = arith.constant 120 : i32
    %165 = tpu.dynamic_rotate %122 by %c120_i32_27 dim 1 : vector<32x128xf32>, i32 -> vector<32x128xf32>
    %166 = vector.broadcast %164 : vector<1x128xf32> to vector<32x128xf32>
    %167 = arith.mulf %165, %166 : vector<32x128xf32>
    %168 = arith.addf %163, %167 : vector<32x128xf32>
    %c0_28 = arith.constant 0 : index
    %c0_29 = arith.constant 0 : index
    %169 = vector.load %arg7[%c0_28, %c0_29] : memref<1x128xf32, #tpu.memory_space<vmem>>, vector<1x128xf32>
    %c0_30 = arith.constant 0 : index
    %c0_31 = arith.constant 0 : index
    %170 = vector.load %arg8[%c0_30, %c0_31] : memref<1x128xf32, #tpu.memory_space<vmem>>, vector<1x128xf32>
    %cst_32 = arith.constant dense<0.000000e+00> : vector<128xf32>
    %171 = vector.multi_reduction <add>, %168, %cst_32 [0] : vector<32x128xf32> to vector<128xf32>
    %172 = vector.shape_cast %171 : vector<128xf32> to vector<1x128xf32>
    %c8_i32_33 = arith.constant 8 : i32
    %173 = tpu.dynamic_rotate %172 by %c8_i32_33 dim 1 : vector<1x128xf32>, i32 -> vector<1x128xf32>
    %174 = arith.addf %172, %173 : vector<1x128xf32>
    %c16_i32_34 = arith.constant 16 : i32
    %175 = tpu.dynamic_rotate %174 by %c16_i32_34 dim 1 : vector<1x128xf32>, i32 -> vector<1x128xf32>
    %176 = arith.addf %174, %175 : vector<1x128xf32>
    %c32_i32_35 = arith.constant 32 : i32
    %177 = tpu.dynamic_rotate %176 by %c32_i32_35 dim 1 : vector<1x128xf32>, i32 -> vector<1x128xf32>
    %178 = arith.addf %176, %177 : vector<1x128xf32>
    %c64_i32_36 = arith.constant 64 : i32
    %179 = tpu.dynamic_rotate %178 by %c64_i32_36 dim 1 : vector<1x128xf32>, i32 -> vector<1x128xf32>
    %180 = arith.addf %178, %179 : vector<1x128xf32>
    %cst_37 = arith.constant 0.001953125 : f32
    %181 = vector.broadcast %cst_37 : f32 to vector<1x128xf32>
    %182 = arith.mulf %180, %181 : vector<1x128xf32>
    %183 = vector.broadcast %182 : vector<1x128xf32> to vector<32x128xf32>
    %184 = arith.subf %168, %183 : vector<32x128xf32>
    %185 = arith.mulf %184, %184 : vector<32x128xf32>
    %cst_38 = arith.constant dense<0.000000e+00> : vector<128xf32>
    %186 = vector.multi_reduction <add>, %185, %cst_38 [0] : vector<32x128xf32> to vector<128xf32>
    %187 = vector.shape_cast %186 : vector<128xf32> to vector<1x128xf32>
    %c8_i32_39 = arith.constant 8 : i32
    %188 = tpu.dynamic_rotate %187 by %c8_i32_39 dim 1 : vector<1x128xf32>, i32 -> vector<1x128xf32>
    %189 = arith.addf %187, %188 : vector<1x128xf32>
    %c16_i32_40 = arith.constant 16 : i32
    %190 = tpu.dynamic_rotate %189 by %c16_i32_40 dim 1 : vector<1x128xf32>, i32 -> vector<1x128xf32>
    %191 = arith.addf %189, %190 : vector<1x128xf32>
    %c32_i32_41 = arith.constant 32 : i32
    %192 = tpu.dynamic_rotate %191 by %c32_i32_41 dim 1 : vector<1x128xf32>, i32 -> vector<1x128xf32>
    %193 = arith.addf %191, %192 : vector<1x128xf32>
    %c64_i32_42 = arith.constant 64 : i32
    %194 = tpu.dynamic_rotate %193 by %c64_i32_42 dim 1 : vector<1x128xf32>, i32 -> vector<1x128xf32>
    %195 = arith.addf %193, %194 : vector<1x128xf32>
    %cst_43 = arith.constant 0.001953125 : f32
    %196 = vector.broadcast %cst_43 : f32 to vector<1x128xf32>
    %197 = arith.mulf %195, %196 : vector<1x128xf32>
    %cst_44 = arith.constant 9.99999974E-6 : f32
    %198 = vector.broadcast %cst_44 : f32 to vector<1x128xf32>
    %199 = arith.addf %197, %198 : vector<1x128xf32>
    %200 = math.rsqrt %199 : vector<1x128xf32>
    %201 = arith.mulf %200, %169 : vector<1x128xf32>
    %202 = vector.broadcast %201 : vector<1x128xf32> to vector<32x128xf32>
    %203 = arith.mulf %184, %202 : vector<32x128xf32>
    %204 = vector.broadcast %170 : vector<1x128xf32> to vector<32x128xf32>
    %205 = arith.addf %203, %204 : vector<32x128xf32>
    %c0_45 = arith.constant 0 : index
    %c0_46 = arith.constant 0 : index
    %206 = vector.load %arg4[%c0_45, %c0_46] : memref<15x128xf32, #tpu.memory_space<vmem>>, vector<15x128xf32>
    %207 = vector.extract_strided_slice %206 {offsets = [7, 0], sizes = [1, 128], strides = [1, 1]} : vector<15x128xf32> to vector<1x128xf32>
    %208 = vector.broadcast %207 : vector<1x128xf32> to vector<32x128xf32>
    %209 = arith.mulf %205, %208 : vector<32x128xf32>
    %c127_i32_47 = arith.constant 127 : i32
    %210 = tpu.dynamic_rotate %205 by %c127_i32_47 dim 1 : vector<32x128xf32>, i32 -> vector<32x128xf32>
    %211 = vector.extract_strided_slice %206 {offsets = [8, 0], sizes = [1, 128], strides = [1, 1]} : vector<15x128xf32> to vector<1x128xf32>
    %212 = vector.broadcast %211 : vector<1x128xf32> to vector<32x128xf32>
    %213 = arith.mulf %210, %212 : vector<32x128xf32>
    %214 = arith.addf %209, %213 : vector<32x128xf32>
    %c1_i32_48 = arith.constant 1 : i32
    %215 = tpu.dynamic_rotate %205 by %c1_i32_48 dim 1 : vector<32x128xf32>, i32 -> vector<32x128xf32>
    %216 = vector.extract_strided_slice %206 {offsets = [6, 0], sizes = [1, 128], strides = [1, 1]} : vector<15x128xf32> to vector<1x128xf32>
    %217 = vector.broadcast %216 : vector<1x128xf32> to vector<32x128xf32>
    %218 = arith.mulf %215, %217 : vector<32x128xf32>
    %219 = arith.addf %214, %218 : vector<32x128xf32>
    %c126_i32_49 = arith.constant 126 : i32
    %220 = tpu.dynamic_rotate %205 by %c126_i32_49 dim 1 : vector<32x128xf32>, i32 -> vector<32x128xf32>
    %221 = vector.extract_strided_slice %206 {offsets = [9, 0], sizes = [1, 128], strides = [1, 1]} : vector<15x128xf32> to vector<1x128xf32>
    %222 = vector.broadcast %221 : vector<1x128xf32> to vector<32x128xf32>
    %223 = arith.mulf %220, %222 : vector<32x128xf32>
    %224 = arith.addf %219, %223 : vector<32x128xf32>
    %c2_i32_50 = arith.constant 2 : i32
    %225 = tpu.dynamic_rotate %205 by %c2_i32_50 dim 1 : vector<32x128xf32>, i32 -> vector<32x128xf32>
    %226 = vector.extract_strided_slice %206 {offsets = [5, 0], sizes = [1, 128], strides = [1, 1]} : vector<15x128xf32> to vector<1x128xf32>
    %227 = vector.broadcast %226 : vector<1x128xf32> to vector<32x128xf32>
    %228 = arith.mulf %225, %227 : vector<32x128xf32>
    %229 = arith.addf %224, %228 : vector<32x128xf32>
    %c125_i32_51 = arith.constant 125 : i32
    %230 = tpu.dynamic_rotate %205 by %c125_i32_51 dim 1 : vector<32x128xf32>, i32 -> vector<32x128xf32>
    %231 = vector.extract_strided_slice %206 {offsets = [10, 0], sizes = [1, 128], strides = [1, 1]} : vector<15x128xf32> to vector<1x128xf32>
    %232 = vector.broadcast %231 : vector<1x128xf32> to vector<32x128xf32>
    %233 = arith.mulf %230, %232 : vector<32x128xf32>
    %234 = arith.addf %229, %233 : vector<32x128xf32>
    %c3_i32_52 = arith.constant 3 : i32
    %235 = tpu.dynamic_rotate %205 by %c3_i32_52 dim 1 : vector<32x128xf32>, i32 -> vector<32x128xf32>
    %236 = vector.extract_strided_slice %206 {offsets = [4, 0], sizes = [1, 128], strides = [1, 1]} : vector<15x128xf32> to vector<1x128xf32>
    %237 = vector.broadcast %236 : vector<1x128xf32> to vector<32x128xf32>
    %238 = arith.mulf %235, %237 : vector<32x128xf32>
    %239 = arith.addf %234, %238 : vector<32x128xf32>
    %c124_i32_53 = arith.constant 124 : i32
    %240 = tpu.dynamic_rotate %205 by %c124_i32_53 dim 1 : vector<32x128xf32>, i32 -> vector<32x128xf32>
    %241 = vector.extract_strided_slice %206 {offsets = [11, 0], sizes = [1, 128], strides = [1, 1]} : vector<15x128xf32> to vector<1x128xf32>
    %242 = vector.broadcast %241 : vector<1x128xf32> to vector<32x128xf32>
    %243 = arith.mulf %240, %242 : vector<32x128xf32>
    %244 = arith.addf %239, %243 : vector<32x128xf32>
    %c4_i32_54 = arith.constant 4 : i32
    %245 = tpu.dynamic_rotate %205 by %c4_i32_54 dim 1 : vector<32x128xf32>, i32 -> vector<32x128xf32>
    %246 = vector.extract_strided_slice %206 {offsets = [3, 0], sizes = [1, 128], strides = [1, 1]} : vector<15x128xf32> to vector<1x128xf32>
    %247 = vector.broadcast %246 : vector<1x128xf32> to vector<32x128xf32>
    %248 = arith.mulf %245, %247 : vector<32x128xf32>
    %249 = arith.addf %244, %248 : vector<32x128xf32>
    %c123_i32_55 = arith.constant 123 : i32
    %250 = tpu.dynamic_rotate %205 by %c123_i32_55 dim 1 : vector<32x128xf32>, i32 -> vector<32x128xf32>
    %251 = vector.extract_strided_slice %206 {offsets = [12, 0], sizes = [1, 128], strides = [1, 1]} : vector<15x128xf32> to vector<1x128xf32>
    %252 = vector.broadcast %251 : vector<1x128xf32> to vector<32x128xf32>
    %253 = arith.mulf %250, %252 : vector<32x128xf32>
    %254 = arith.addf %249, %253 : vector<32x128xf32>
    %c5_i32_56 = arith.constant 5 : i32
    %255 = tpu.dynamic_rotate %205 by %c5_i32_56 dim 1 : vector<32x128xf32>, i32 -> vector<32x128xf32>
    %256 = vector.extract_strided_slice %206 {offsets = [2, 0], sizes = [1, 128], strides = [1, 1]} : vector<15x128xf32> to vector<1x128xf32>
    %257 = vector.broadcast %256 : vector<1x128xf32> to vector<32x128xf32>
    %258 = arith.mulf %255, %257 : vector<32x128xf32>
    %259 = arith.addf %254, %258 : vector<32x128xf32>
    %c122_i32_57 = arith.constant 122 : i32
    %260 = tpu.dynamic_rotate %205 by %c122_i32_57 dim 1 : vector<32x128xf32>, i32 -> vector<32x128xf32>
    %261 = vector.extract_strided_slice %206 {offsets = [13, 0], sizes = [1, 128], strides = [1, 1]} : vector<15x128xf32> to vector<1x128xf32>
    %262 = vector.broadcast %261 : vector<1x128xf32> to vector<32x128xf32>
    %263 = arith.mulf %260, %262 : vector<32x128xf32>
    %264 = arith.addf %259, %263 : vector<32x128xf32>
    %c6_i32_58 = arith.constant 6 : i32
    %265 = tpu.dynamic_rotate %205 by %c6_i32_58 dim 1 : vector<32x128xf32>, i32 -> vector<32x128xf32>
    %266 = vector.extract_strided_slice %206 {offsets = [1, 0], sizes = [1, 128], strides = [1, 1]} : vector<15x128xf32> to vector<1x128xf32>
    %267 = vector.broadcast %266 : vector<1x128xf32> to vector<32x128xf32>
    %268 = arith.mulf %265, %267 : vector<32x128xf32>
    %269 = arith.addf %264, %268 : vector<32x128xf32>
    %c121_i32_59 = arith.constant 121 : i32
    %270 = tpu.dynamic_rotate %205 by %c121_i32_59 dim 1 : vector<32x128xf32>, i32 -> vector<32x128xf32>
    %271 = vector.extract_strided_slice %206 {offsets = [14, 0], sizes = [1, 128], strides = [1, 1]} : vector<15x128xf32> to vector<1x128xf32>
    %272 = vector.broadcast %271 : vector<1x128xf32> to vector<32x128xf32>
    %273 = arith.mulf %270, %272 : vector<32x128xf32>
    %274 = arith.addf %269, %273 : vector<32x128xf32>
    %c7_i32_60 = arith.constant 7 : i32
    %275 = tpu.dynamic_rotate %205 by %c7_i32_60 dim 1 : vector<32x128xf32>, i32 -> vector<32x128xf32>
    %276 = vector.extract_strided_slice %206 {offsets = [0, 0], sizes = [1, 128], strides = [1, 1]} : vector<15x128xf32> to vector<1x128xf32>
    %277 = vector.broadcast %276 : vector<1x128xf32> to vector<32x128xf32>
    %278 = arith.mulf %275, %277 : vector<32x128xf32>
    %279 = arith.addf %274, %278 : vector<32x128xf32>
    %c0_61 = arith.constant 0 : index
    %c0_62 = arith.constant 0 : index
    %280 = vector.load %arg9[%c0_61, %c0_62] : memref<1x128xf32, #tpu.memory_space<vmem>>, vector<1x128xf32>
    %c0_63 = arith.constant 0 : index
    %c0_64 = arith.constant 0 : index
    %281 = vector.load %arg10[%c0_63, %c0_64] : memref<1x128xf32, #tpu.memory_space<vmem>>, vector<1x128xf32>
    %cst_65 = arith.constant dense<0.000000e+00> : vector<128xf32>
    %282 = vector.multi_reduction <add>, %279, %cst_65 [0] : vector<32x128xf32> to vector<128xf32>
    %283 = vector.shape_cast %282 : vector<128xf32> to vector<1x128xf32>
    %c8_i32_66 = arith.constant 8 : i32
    %284 = tpu.dynamic_rotate %283 by %c8_i32_66 dim 1 : vector<1x128xf32>, i32 -> vector<1x128xf32>
    %285 = arith.addf %283, %284 : vector<1x128xf32>
    %c16_i32_67 = arith.constant 16 : i32
    %286 = tpu.dynamic_rotate %285 by %c16_i32_67 dim 1 : vector<1x128xf32>, i32 -> vector<1x128xf32>
    %287 = arith.addf %285, %286 : vector<1x128xf32>
    %c32_i32_68 = arith.constant 32 : i32
    %288 = tpu.dynamic_rotate %287 by %c32_i32_68 dim 1 : vector<1x128xf32>, i32 -> vector<1x128xf32>
    %289 = arith.addf %287, %288 : vector<1x128xf32>
    %c64_i32_69 = arith.constant 64 : i32
    %290 = tpu.dynamic_rotate %289 by %c64_i32_69 dim 1 : vector<1x128xf32>, i32 -> vector<1x128xf32>
    %291 = arith.addf %289, %290 : vector<1x128xf32>
    %cst_70 = arith.constant 0.001953125 : f32
    %292 = vector.broadcast %cst_70 : f32 to vector<1x128xf32>
    %293 = arith.mulf %291, %292 : vector<1x128xf32>
    %294 = vector.broadcast %293 : vector<1x128xf32> to vector<32x128xf32>
    %295 = arith.subf %279, %294 : vector<32x128xf32>
    %296 = arith.mulf %295, %295 : vector<32x128xf32>
    %cst_71 = arith.constant dense<0.000000e+00> : vector<128xf32>
    %297 = vector.multi_reduction <add>, %296, %cst_71 [0] : vector<32x128xf32> to vector<128xf32>
    %298 = vector.shape_cast %297 : vector<128xf32> to vector<1x128xf32>
    %c8_i32_72 = arith.constant 8 : i32
    %299 = tpu.dynamic_rotate %298 by %c8_i32_72 dim 1 : vector<1x128xf32>, i32 -> vector<1x128xf32>
    %300 = arith.addf %298, %299 : vector<1x128xf32>
    %c16_i32_73 = arith.constant 16 : i32
    %301 = tpu.dynamic_rotate %300 by %c16_i32_73 dim 1 : vector<1x128xf32>, i32 -> vector<1x128xf32>
    %302 = arith.addf %300, %301 : vector<1x128xf32>
    %c32_i32_74 = arith.constant 32 : i32
    %303 = tpu.dynamic_rotate %302 by %c32_i32_74 dim 1 : vector<1x128xf32>, i32 -> vector<1x128xf32>
    %304 = arith.addf %302, %303 : vector<1x128xf32>
    %c64_i32_75 = arith.constant 64 : i32
    %305 = tpu.dynamic_rotate %304 by %c64_i32_75 dim 1 : vector<1x128xf32>, i32 -> vector<1x128xf32>
    %306 = arith.addf %304, %305 : vector<1x128xf32>
    %cst_76 = arith.constant 0.001953125 : f32
    %307 = vector.broadcast %cst_76 : f32 to vector<1x128xf32>
    %308 = arith.mulf %306, %307 : vector<1x128xf32>
    %cst_77 = arith.constant 9.99999974E-6 : f32
    %309 = vector.broadcast %cst_77 : f32 to vector<1x128xf32>
    %310 = arith.addf %308, %309 : vector<1x128xf32>
    %311 = math.rsqrt %310 : vector<1x128xf32>
    %312 = arith.mulf %311, %280 : vector<1x128xf32>
    %313 = vector.broadcast %312 : vector<1x128xf32> to vector<32x128xf32>
    %314 = arith.mulf %295, %313 : vector<32x128xf32>
    %315 = vector.broadcast %281 : vector<1x128xf32> to vector<32x128xf32>
    %316 = arith.addf %314, %315 : vector<32x128xf32>
    %cst_78 = arith.constant 0.000000e+00 : f32
    %317 = vector.broadcast %cst_78 : f32 to vector<32x128xf32>
    %318 = arith.maximumf %316, %317 : vector<32x128xf32>
    %cst_79 = arith.constant 6.000000e+00 : f32
    %319 = vector.broadcast %cst_79 : f32 to vector<32x128xf32>
    %320 = arith.minimumf %318, %319 : vector<32x128xf32>
    %c0_80 = arith.constant 0 : index
    %c0_81 = arith.constant 0 : index
    %321 = vector.load %arg11[%c0_80, %c0_81] : memref<32x128xf32, #tpu.memory_space<vmem>>, vector<32x128xf32>
    tpu.vector_store %arg11[%c0_80, %c0_81], %320 {strides = array<i32>} : memref<32x128xf32, #tpu.memory_space<vmem>>, vector<32x128xf32>,
    return
  }
}

</mosaic_0001>

<llo_original>
// kernel: tile.280
$region0: #{tile.280}
  #allocation0 [shape = 's32[1]{0}', space=sflag, size = 0x4, scoped, tag = 'scoped memory for tile.280']
  %s0 = inlined_call_operand.vmem [shape: f32[8], index: 0, kind: input, shape index: {}]
  %s1 = inlined_call_operand.vmem [shape: f32[16,8], index: 1, kind: output, shape index: {}]
  // Predicated region
  $region2: #{tile.280} parent=0 // pred_check
    _
  $region3: #{tile.280} parent=0 // pred_check_branch
    %3 = sbr.rel (0) target = $region5
  $region4: #{tile.280} parent=0 // pred_region
    _
  $region5: #{tile.280} parent=0 // pred_fallthru
    _
  %v4 = vld [vmem:[%s0] ss:$0 sm:$0xff]
  %5 = vst [vmem:[%s1] sm:$0xff] %v4
  %s6 = scalar_lea.vmem %s1, 8
  %7 = vst [vmem:[%s6] sm:$0xff] %v4

// kernel: tile.316
$region0: #{tile.316}
  %s0 = inlined_call_operand.vmem [shape: f32[16,8], index: 0, kind: input, shape index: {}]
  %s1 = inlined_call_operand.vmem [shape: f32[1,128], index: 1, kind: output, shape index: {}]
  $region1: #{tile.316} parent=0
    #allocation0 [shape = 'u8[4096]{0}', space=vmem, size = 0x1000, scoped, tag = 'scoped mem for output reshape']
    %v2 = vld [vmem:[%s0] sm:$0x1]
    %vm3 = vcmask 64512
    %4 = vst.msk [vmem:[#allocation0] sm:$0x1] %vm3, %v2
    %s5 = scalar_lea.vmem %s0, 15
    %v6 = vld [vmem:[%s5] sm:$0x1]
    %7 = vrot.lane.b32.xlu0 %v6, 120
    %v8 = vpop.permute.xlu0 %7
    %vm9 = vcmask 1048512
    %10 = vst.msk [vmem:[#allocation0] sm:$0x1] %vm9, %v8
    %s11 = scalar_lea.vmem %s0, 14
    %v12 = vld [vmem:[%s11] sm:$0x1]
    %13 = vrot.lane.b32.xlu0 %v12, 112
    %v14 = vpop.permute.xlu0 %13
    %vm15 = vcmask 982912
    %16 = vst.msk [vmem:[#allocation0] sm:$0x1] %vm15, %v14
    %s17 = scalar_lea.vmem %s0, 13
    %v18 = vld [vmem:[%s17] sm:$0x1]
    %19 = vrot.lane.b32.xlu0 %v18, 104
    %v20 = vpop.permute.xlu0 %19
    %vm21 = vcmask 917312
    %22 = vst.msk [vmem:[#allocation0] sm:$0x1] %vm21, %v20
    %s23 = scalar_lea.vmem %s0, 12
    %v24 = vld [vmem:[%s23] sm:$0x1]
    %25 = vrot.lane.b32.xlu0 %v24, 96
    %v26 = vpop.permute.xlu0 %25
    %vm27 = vcmask 851712
    %28 = vst.msk [vmem:[#allocation0] sm:$0x1] %vm27, %v26
    %s29 = scalar_lea.vmem %s0, 11
    %v30 = vld [vmem:[%s29] sm:$0x1]
    %31 = vrot.lane.b32.xlu0 %v30, 88
    %v32 = vpop.permute.xlu0 %31
    %vm33 = vcmask 786112
    %34 = vst.msk [vmem:[#allocation0] sm:$0x1] %vm33, %v32
    %s35 = scalar_lea.vmem %s0, 10
    %v36 = vld [vmem:[%s35] sm:$0x1]
    %37 = vrot.lane.b32.xlu0 %v36, 80
    %v38 = vpop.permute.xlu0 %37
    %vm39 = vcmask 720512
    %40 = vst.msk [vmem:[#allocation0] sm:$0x1] %vm39, %v38
    %s41 = scalar_lea.vmem %s0, 9
    %v42 = vld [vmem:[%s41] sm:$0x1]
    %43 = vrot.lane.b32.xlu0 %v42, 72
    %v44 = vpop.permute.xlu0 %43
    %vm45 = vcmask 654912
    %46 = vst.msk [vmem:[#allocation0] sm:$0x1] %vm45, %v44
    %s47 = scalar_lea.vmem %s0, 8
    %v48 = vld [vmem:[%s47] sm:$0x1]
    %49 = vrot.lane.b32.xlu0 %v48, 64
    %v50 = vpop.permute.xlu0 %49
    %vm51 = vcmask 589312
    %52 = vst.msk [vmem:[#allocation0] sm:$0x1] %vm51, %v50
    %s53 = scalar_lea.vmem %s0, 7
    %v54 = vld [vmem:[%s53] sm:$0x1]
    %55 = vrot.lane.b32.xlu0 %v54, 56
    %v56 = vpop.permute.xlu0 %55
    %vm57 = vcmask 523712
    %58 = vst.msk [vmem:[#allocation0] sm:$0x1] %vm57, %v56
    %s59 = scalar_lea.vmem %s0, 6
    %v60 = vld [vmem:[%s59] sm:$0x1]
    %61 = vrot.lane.b32.xlu0 %v60, 48
    %v62 = vpop.permute.xlu0 %61
    %vm63 = vcmask 458112
    %64 = vst.msk [vmem:[#allocation0] sm:$0x1] %vm63, %v62
    %s65 = scalar_lea.vmem %s0, 5
    %v66 = vld [vmem:[%s65] sm:$0x1]
    %67 = vrot.lane.b32.xlu0 %v66, 40
    %v68 = vpop.permute.xlu0 %67
    %vm69 = vcmask 392512
    %70 = vst.msk [vmem:[#allocation0] sm:$0x1] %vm69, %v68
    %s71 = scalar_lea.vmem %s0, 4
    %v72 = vld [vmem:[%s71] sm:$0x1]
    %73 = vrot.lane.b32.xlu0 %v72, 32
    %v74 = vpop.permute.xlu0 %73
    %vm75 = vcmask 326912
    %76 = vst.msk [vmem:[#allocation0] sm:$0x1] %vm75, %v74
    %s77 = scalar_lea.vmem %s0, 3
    %v78 = vld [vmem:[%s77] sm:$0x1]
    %79 = vrot.lane.b32.xlu0 %v78, 24
    %v80 = vpop.permute.xlu0 %79
    %vm81 = vcmask 261312
    %82 = vst.msk [vmem:[#allocation0] sm:$0x1] %vm81, %v80
    %s83 = scalar_lea.vmem %s0, 2
    %v84 = vld [vmem:[%s83] sm:$0x1]
    %85 = vrot.lane.b32.xlu0 %v84, 16
    %v86 = vpop.permute.xlu0 %85
    %vm87 = vcmask 195712
    %88 = vst.msk [vmem:[#allocation0] sm:$0x1] %vm87, %v86
    %s89 = scalar_lea.vmem %s0, 1
    %v90 = vld [vmem:[%s89] sm:$0x1]
    %91 = vrot.lane.b32.xlu0 %v90, 8
    %v92 = vpop.permute.xlu0 %91
    %vm93 = vcmask 130112
    %94 = vst.msk [vmem:[#allocation0] sm:$0x1] %vm93, %v92
    %s96 = sshllo.u32 0, 1
    %v98 = vld [vmem:[#allocation0] sm:%s96]
    %s99 = sshllo.u32 0, 1
    %100 = vst [vmem:[%s1] sm:%s99] %v98

// kernel: shuffle_unit_forward.1
$region0: #{shuffle_unit_forward.1}
  #allocation0 [shape = 'u32[]', space=smem, size = 0x4, offset = 0x4, fixed_abs, tag = 'smem constant byte address 0x4 - core index']
  #allocation1 [shape = 'u32[144,128]{1,0:T(1,128)}', space=vmem, size = 0x12000, scoped, tag = 'internal scratch']
  %s0 = inlined_call_operand.vmem [shape: f32[32,128], index: 0, kind: input, shape index: {}]
  %s1 = inlined_call_operand.vmem [shape: f32[32,2], index: 1, kind: input, shape index: {}]
  %s2 = inlined_call_operand.vmem [shape: f32[15,128], index: 2, kind: input, shape index: {}]
  %s3 = inlined_call_operand.vmem [shape: f32[9,128], index: 3, kind: input, shape index: {}]
  %s4 = inlined_call_operand.vmem [shape: f32[15,128], index: 4, kind: input, shape index: {}]
  %s5 = inlined_call_operand.vmem [shape: f32[1,128], index: 5, kind: input, shape index: {}]
  %s6 = inlined_call_operand.vmem [shape: f32[1,128], index: 6, kind: input, shape index: {}]
  %s7 = inlined_call_operand.vmem [shape: f32[1,128], index: 7, kind: input, shape index: {}]
  %s8 = inlined_call_operand.vmem [shape: f32[1,128], index: 8, kind: input, shape index: {}]
  %s9 = inlined_call_operand.vmem [shape: f32[1,128], index: 9, kind: input, shape index: {}]
  %s10 = inlined_call_operand.vmem [shape: f32[1,128], index: 10, kind: input, shape index: {}]
  %s11 = inlined_call_operand.vmem [shape: f32[32,128], index: 11, kind: output, shape index: {}]
  %s12 = sld [smem:[#allocation0]]
  $region54: #{shuffle_unit_forward.1} parent=0
    _
  %s14 = ssub.s32 1, %s12
  %s15 = scalar_select 0, %s14, %s12
  // Predicated region
  $region2: #{shuffle_unit_forward.1} parent=0 // pred_check
    _
  $region3: #{shuffle_unit_forward.1} parent=0 // pred_check_branch
    %17 = sbr.rel (0) target = $region5
  $region4: #{shuffle_unit_forward.1} parent=0 // pred_region
    _
  $region5: #{shuffle_unit_forward.1} parent=0 // pred_fallthru
    _
  // Predicated region
  $region6: #{shuffle_unit_forward.1} parent=0 // pred_check
    _
  $region7: #{shuffle_unit_forward.1} parent=0 // pred_check_branch
    %19 = sbr.rel (0) target = $region9
  $region8: #{shuffle_unit_forward.1} parent=0 // pred_region
    _
  $region9: #{shuffle_unit_forward.1} parent=0 // pred_fallthru
    _
  // Predicated region
  $region10: #{shuffle_unit_forward.1} parent=0 // pred_check
    _
  $region11: #{shuffle_unit_forward.1} parent=0 // pred_check_branch
    %21 = sbr.rel (0) target = $region13
  $region12: #{shuffle_unit_forward.1} parent=0 // pred_region
    _
  $region13: #{shuffle_unit_forward.1} parent=0 // pred_fallthru
    _
  // Predicated region
  $region14: #{shuffle_unit_forward.1} parent=0 // pred_check
    _
  $region15: #{shuffle_unit_forward.1} parent=0 // pred_check_branch
    %23 = sbr.rel (0) target = $region17
  $region16: #{shuffle_unit_forward.1} parent=0 // pred_region
    _
  $region17: #{shuffle_unit_forward.1} parent=0 // pred_fallthru
    _
  // Predicated region
  $region18: #{shuffle_unit_forward.1} parent=0 // pred_check
    _
  $region19: #{shuffle_unit_forward.1} parent=0 // pred_check_branch
    %25 = sbr.rel (0) target = $region21
  $region20: #{shuffle_unit_forward.1} parent=0 // pred_region
    _
  $region21: #{shuffle_unit_forward.1} parent=0 // pred_fallthru
    _
  // Predicated region
  $region22: #{shuffle_unit_forward.1} parent=0 // pred_check
    _
  $region23: #{shuffle_unit_forward.1} parent=0 // pred_check_branch
    %27 = sbr.rel (0) target = $region25
  $region24: #{shuffle_unit_forward.1} parent=0 // pred_region
    _
  $region25: #{shuffle_unit_forward.1} parent=0 // pred_fallthru
    _
  // Predicated region
  $region26: #{shuffle_unit_forward.1} parent=0 // pred_check
    _
  $region27: #{shuffle_unit_forward.1} parent=0 // pred_check_branch
    %29 = sbr.rel (0) target = $region29
  $region28: #{shuffle_unit_forward.1} parent=0 // pred_region
    _
  $region29: #{shuffle_unit_forward.1} parent=0 // pred_fallthru
    _
  // Predicated region
  $region30: #{shuffle_unit_forward.1} parent=0 // pred_check
    _
  $region31: #{shuffle_unit_forward.1} parent=0 // pred_check_branch
    %31 = sbr.rel (0) target = $region33
  $region32: #{shuffle_unit_forward.1} parent=0 // pred_region
    _
  $region33: #{shuffle_unit_forward.1} parent=0 // pred_fallthru
    _
  // Predicated region
  $region34: #{shuffle_unit_forward.1} parent=0 // pred_check
    _
  $region35: #{shuffle_unit_forward.1} parent=0 // pred_check_branch
    %33 = sbr.rel (0) target = $region37
  $region36: #{shuffle_unit_forward.1} parent=0 // pred_region
    _
  $region37: #{shuffle_unit_forward.1} parent=0 // pred_fallthru
    _
  // Predicated region
  $region38: #{shuffle_unit_forward.1} parent=0 // pred_check
    _
  $region39: #{shuffle_unit_forward.1} parent=0 // pred_check_branch
    %35 = sbr.rel (0) target = $region41
  $region40: #{shuffle_unit_forward.1} parent=0 // pred_region
    _
  $region41: #{shuffle_unit_forward.1} parent=0 // pred_fallthru
    _
  // Predicated region
  $region42: #{shuffle_unit_forward.1} parent=0 // pred_check
    _
  $region43: #{shuffle_unit_forward.1} parent=0 // pred_check_branch
    %37 = sbr.rel (0) target = $region45
  $region44: #{shuffle_unit_forward.1} parent=0 // pred_region
    _
  $region45: #{shuffle_unit_forward.1} parent=0 // pred_fallthru
    _
  %v38 = vld [vmem:[%s0] sm:$0xff]
  %v39 = vld [vmem:[%s0 + $0x8] sm:$0xff]
  %v40 = vld [vmem:[%s0 + $0x10] sm:$0xff]
  %v41 = vld [vmem:[%s0 + $0x18] sm:$0xff]
  %v42 = vld [vmem:[%s2] sm:$0xff]
  %v43 = vld [vmem:[%s2 + $0x8] sm:$0x7f]
  %v44 = vlaneseq
  %v45 = vshrl.u32 %v44, 7
  %v46 = vsub.s32 7, %v45
  %v47 = vrot.slane %v42, %v46
  %v48 = vmul.f32 %v38, %v47
  %v49 = vmul.f32 %v39, %v47
  %v50 = vmul.f32 %v40, %v47
  %v51 = vmul.f32 %v41, %v47
  %52 = vrot.lane.b32.xlu0 %v38, 127
  %v53 = vpop.permute.xlu0 %52
  %54 = vrot.lane.b32.xlu0 %v39, 127
  %v55 = vpop.permute.xlu0 %54
  %56 = vrot.lane.b32.xlu0 %v40, 127
  %v57 = vpop.permute.xlu0 %56
  %58 = vrot.lane.b32.xlu0 %v41, 127
  %v59 = vpop.permute.xlu0 %58
  %v60 = vlaneseq
  %v61 = vshrl.u32 %v60, 7
  %v62 = vsub.s32 0, %v61
  %v63 = vrot.slane %v43, %v62
  %v64 = vmul.f32 %v53, %v63
  %v65 = vmul.f32 %v55, %v63
  %v66 = vmul.f32 %v57, %v63
  %v67 = vmul.f32 %v59, %v63
  %v68 = vadd.f32 %v48, %v64
  %v69 = vadd.f32 %v49, %v65
  %v70 = vadd.f32 %v50, %v66
  %v71 = vadd.f32 %v51, %v67
  %72 = vrot.lane.b32.xlu0 %v38, 1
  %v73 = vpop.permute.xlu0 %72
  %74 = vrot.lane.b32.xlu0 %v39, 1
  %v75 = vpop.permute.xlu0 %74
  %76 = vrot.lane.b32.xlu0 %v40, 1
  %v77 = vpop.permute.xlu0 %76
  %78 = vrot.lane.b32.xlu0 %v41, 1
  %v79 = vpop.permute.xlu0 %78
  %v80 = vlaneseq
  %v81 = vshrl.u32 %v80, 7
  %v82 = vsub.s32 6, %v81
  %v83 = vrot.slane %v42, %v82
  %v84 = vmul.f32 %v73, %v83
  %v85 = vmul.f32 %v75, %v83
  %v86 = vmul.f32 %v77, %v83
  %v87 = vmul.f32 %v79, %v83
  %v88 = vadd.f32 %v68, %v84
  %v89 = vadd.f32 %v69, %v85
  %v90 = vadd.f32 %v70, %v86
  %v91 = vadd.f32 %v71, %v87
  %92 = vrot.lane.b32.xlu0 %v38, 126
  %v93 = vpop.permute.xlu0 %92
  %94 = vrot.lane.b32.xlu0 %v39, 126
  %v95 = vpop.permute.xlu0 %94
  %96 = vrot.lane.b32.xlu0 %v40, 126
  %v97 = vpop.permute.xlu0 %96
  %98 = vrot.lane.b32.xlu0 %v41, 126
  %v99 = vpop.permute.xlu0 %98
  %v100 = vlaneseq
  %v101 = vshrl.u32 %v100, 7
  %v102 = vsub.s32 1, %v101
  %v103 = vrot.slane %v43, %v102
  %v104 = vmul.f32 %v93, %v103
  %v105 = vmul.f32 %v95, %v103
  %v106 = vmul.f32 %v97, %v103
  %v107 = vmul.f32 %v99, %v103
  %v108 = vadd.f32 %v88, %v104
  %v109 = vadd.f32 %v89, %v105
  %v110 = vadd.f32 %v90, %v106
  %v111 = vadd.f32 %v91, %v107
  %112 = vrot.lane.b32.xlu0 %v38, 2
  %v113 = vpop.permute.xlu0 %112
  %114 = vrot.lane.b32.xlu0 %v39, 2
  %v115 = vpop.permute.xlu0 %114
  %116 = vrot.lane.b32.xlu0 %v40, 2
  %v117 = vpop.permute.xlu0 %116
  %118 = vrot.lane.b32.xlu0 %v41, 2
  %v119 = vpop.permute.xlu0 %118
  %v120 = vlaneseq
  %v121 = vshrl.u32 %v120, 7
  %v122 = vsub.s32 5, %v121
  %v123 = vrot.slane %v42, %v122
  %v124 = vmul.f32 %v113, %v123
  %v125 = vmul.f32 %v115, %v123
  %v126 = vmul.f32 %v117, %v123
  %v127 = vmul.f32 %v119, %v123
  %v128 = vadd.f32 %v108, %v124
  %v129 = vadd.f32 %v109, %v125
  %v130 = vadd.f32 %v110, %v126
  %v131 = vadd.f32 %v111, %v127
  %132 = vrot.lane.b32.xlu0 %v38, 125
  %v133 = vpop.permute.xlu0 %132
  %134 = vrot.lane.b32.xlu0 %v39, 125
  %v135 = vpop.permute.xlu0 %134
  %136 = vrot.lane.b32.xlu0 %v40, 125
  %v137 = vpop.permute.xlu0 %136
  %138 = vrot.lane.b32.xlu0 %v41, 125
  %v139 = vpop.permute.xlu0 %138
  %v140 = vlaneseq
  %v141 = vshrl.u32 %v140, 7
  %v142 = vsub.s32 2, %v141
  %v143 = vrot.slane %v43, %v142
  %v144 = vmul.f32 %v133, %v143
  %v145 = vmul.f32 %v135, %v143
  %v146 = vmul.f32 %v137, %v143
  %v147 = vmul.f32 %v139, %v143
  %v148 = vadd.f32 %v128, %v144
  %v149 = vadd.f32 %v129, %v145
  %v150 = vadd.f32 %v130, %v146
  %v151 = vadd.f32 %v131, %v147
  %152 = vrot.lane.b32.xlu0 %v38, 3
  %v153 = vpop.permute.xlu0 %152
  %154 = vrot.lane.b32.xlu0 %v39, 3
  %v155 = vpop.permute.xlu0 %154
  %156 = vrot.lane.b32.xlu0 %v40, 3
  %v157 = vpop.permute.xlu0 %156
  %158 = vrot.lane.b32.xlu0 %v41, 3
  %v159 = vpop.permute.xlu0 %158
  %v160 = vlaneseq
  %v161 = vshrl.u32 %v160, 7
  %v162 = vsub.s32 4, %v161
  %v163 = vrot.slane %v42, %v162
  %v164 = vmul.f32 %v153, %v163
  %v165 = vmul.f32 %v155, %v163
  %v166 = vmul.f32 %v157, %v163
  %v167 = vmul.f32 %v159, %v163
  %v168 = vadd.f32 %v148, %v164
  %v169 = vadd.f32 %v149, %v165
  %v170 = vadd.f32 %v150, %v166
  %v171 = vadd.f32 %v151, %v167
  %172 = vrot.lane.b32.xlu0 %v38, 124
  %v173 = vpop.permute.xlu0 %172
  %174 = vrot.lane.b32.xlu0 %v39, 124
  %v175 = vpop.permute.xlu0 %174
  %176 = vrot.lane.b32.xlu0 %v40, 124
  %v177 = vpop.permute.xlu0 %176
  %178 = vrot.lane.b32.xlu0 %v41, 124
  %v179 = vpop.permute.xlu0 %178
  %v180 = vlaneseq
  %v181 = vshrl.u32 %v180, 7
  %v182 = vsub.s32 3, %v181
  %v183 = vrot.slane %v43, %v182
  %v184 = vmul.f32 %v173, %v183
  %v185 = vmul.f32 %v175, %v183
  %v186 = vmul.f32 %v177, %v183
  %v187 = vmul.f32 %v179, %v183
  %v188 = vadd.f32 %v168, %v184
  %v189 = vadd.f32 %v169, %v185
  %v190 = vadd.f32 %v170, %v186
  %v191 = vadd.f32 %v171, %v187
  %192 = vrot.lane.b32.xlu0 %v38, 4
  %v193 = vpop.permute.xlu0 %192
  %194 = vrot.lane.b32.xlu0 %v39, 4
  %v195 = vpop.permute.xlu0 %194
  %196 = vrot.lane.b32.xlu0 %v40, 4
  %v197 = vpop.permute.xlu0 %196
  %198 = vrot.lane.b32.xlu0 %v41, 4
  %v199 = vpop.permute.xlu0 %198
  %v200 = vlaneseq
  %v201 = vshrl.u32 %v200, 7
  %v202 = vsub.s32 3, %v201
  %v203 = vrot.slane %v42, %v202
  %v204 = vmul.f32 %v193, %v203
  %v205 = vmul.f32 %v195, %v203
  %v206 = vmul.f32 %v197, %v203
  %v207 = vmul.f32 %v199, %v203
  %v208 = vadd.f32 %v188, %v204
  %v209 = vadd.f32 %v189, %v205
  %v210 = vadd.f32 %v190, %v206
  %v211 = vadd.f32 %v191, %v207
  %212 = vrot.lane.b32.xlu0 %v38, 123
  %v213 = vpop.permute.xlu0 %212
  %214 = vrot.lane.b32.xlu0 %v39, 123
  %v215 = vpop.permute.xlu0 %214
  %216 = vrot.lane.b32.xlu0 %v40, 123
  %v217 = vpop.permute.xlu0 %216
  %218 = vrot.lane.b32.xlu0 %v41, 123
  %v219 = vpop.permute.xlu0 %218
  %v220 = vlaneseq
  %v221 = vshrl.u32 %v220, 7
  %v222 = vsub.s32 4, %v221
  %v223 = vrot.slane %v43, %v222
  %v224 = vmul.f32 %v213, %v223
  %v225 = vmul.f32 %v215, %v223
  %v226 = vmul.f32 %v217, %v223
  %v227 = vmul.f32 %v219, %v223
  %v228 = vadd.f32 %v208, %v224
  %v229 = vadd.f32 %v209, %v225
  %v230 = vadd.f32 %v210, %v226
  %v231 = vadd.f32 %v211, %v227
  %232 = vrot.lane.b32.xlu0 %v38, 5
  %v233 = vpop.permute.xlu0 %232
  %234 = vrot.lane.b32.xlu0 %v39, 5
  %v235 = vpop.permute.xlu0 %234
  %236 = vrot.lane.b32.xlu0 %v40, 5
  %v237 = vpop.permute.xlu0 %236
  %238 = vrot.lane.b32.xlu0 %v41, 5
  %v239 = vpop.permute.xlu0 %238
  %v240 = vlaneseq
  %v241 = vshrl.u32 %v240, 7
  %v242 = vsub.s32 2, %v241
  %v243 = vrot.slane %v42, %v242
  %v244 = vmul.f32 %v233, %v243
  %v245 = vmul.f32 %v235, %v243
  %v246 = vmul.f32 %v237, %v243
  %v247 = vmul.f32 %v239, %v243
  %v248 = vadd.f32 %v228, %v244
  %v249 = vadd.f32 %v229, %v245
  %v250 = vadd.f32 %v230, %v246
  %v251 = vadd.f32 %v231, %v247
  %252 = vrot.lane.b32.xlu0 %v38, 122
  %v253 = vpop.permute.xlu0 %252
  %254 = vrot.lane.b32.xlu0 %v39, 122
  %v255 = vpop.permute.xlu0 %254
  %256 = vrot.lane.b32.xlu0 %v40, 122
  %v257 = vpop.permute.xlu0 %256
  %258 = vrot.lane.b32.xlu0 %v41, 122
  %v259 = vpop.permute.xlu0 %258
  %v260 = vlaneseq
  %v261 = vshrl.u32 %v260, 7
  %v262 = vsub.s32 5, %v261
  %v263 = vrot.slane %v43, %v262
  %v264 = vmul.f32 %v253, %v263
  %v265 = vmul.f32 %v255, %v263
  %v266 = vmul.f32 %v257, %v263
  %v267 = vmul.f32 %v259, %v263
  %v268 = vadd.f32 %v248, %v264
  %v269 = vadd.f32 %v249, %v265
  %v270 = vadd.f32 %v250, %v266
  %v271 = vadd.f32 %v251, %v267
  %272 = vrot.lane.b32.xlu0 %v38, 6
  %v273 = vpop.permute.xlu0 %272
  %274 = vrot.lane.b32.xlu0 %v39, 6
  %v275 = vpop.permute.xlu0 %274
  %276 = vrot.lane.b32.xlu0 %v40, 6
  %v277 = vpop.permute.xlu0 %276
  %278 = vrot.lane.b32.xlu0 %v41, 6
  %v279 = vpop.permute.xlu0 %278
  %v280 = vlaneseq
  %v281 = vshrl.u32 %v280, 7
  %v282 = vsub.s32 1, %v281
  %v283 = vrot.slane %v42, %v282
  %v284 = vmul.f32 %v273, %v283
  %v285 = vmul.f32 %v275, %v283
  %v286 = vmul.f32 %v277, %v283
  %v287 = vmul.f32 %v279, %v283
  %v288 = vadd.f32 %v268, %v284
  %v289 = vadd.f32 %v269, %v285
  %v290 = vadd.f32 %v270, %v286
  %v291 = vadd.f32 %v271, %v287
  %292 = vrot.lane.b32.xlu0 %v38, 121
  %v293 = vpop.permute.xlu0 %292
  %294 = vrot.lane.b32.xlu0 %v39, 121
  %v295 = vpop.permute.xlu0 %294
  %296 = vrot.lane.b32.xlu0 %v40, 121
  %v297 = vpop.permute.xlu0 %296
  %298 = vrot.lane.b32.xlu0 %v41, 121
  %v299 = vpop.permute.xlu0 %298
  %v300 = vlaneseq
  %v301 = vshrl.u32 %v300, 7
  %v302 = vsub.s32 6, %v301
  %v303 = vrot.slane %v43, %v302
  %v304 = vmul.f32 %v293, %v303
  %v305 = vmul.f32 %v295, %v303
  %v306 = vmul.f32 %v297, %v303
  %v307 = vmul.f32 %v299, %v303
  %v308 = vadd.f32 %v288, %v304
  %v309 = vadd.f32 %v289, %v305
  %v310 = vadd.f32 %v290, %v306
  %v311 = vadd.f32 %v291, %v307
  %312 = vrot.lane.b32.xlu0 %v38, 7
  %v313 = vpop.permute.xlu0 %312
  %314 = vrot.lane.b32.xlu0 %v39, 7
  %v315 = vpop.permute.xlu0 %314
  %316 = vrot.lane.b32.xlu0 %v40, 7
  %v317 = vpop.permute.xlu0 %316
  %318 = vrot.lane.b32.xlu0 %v41, 7
  %v319 = vpop.permute.xlu0 %318
  %v320 = vlaneseq
  %v321 = vshrl.u32 %v320, 7
  %v322 = vsub.s32 0, %v321
  %v323 = vrot.slane %v42, %v322
  %v324 = vmul.f32 %v313, %v323
  %v325 = vmul.f32 %v315, %v323
  %v326 = vmul.f32 %v317, %v323
  %v327 = vmul.f32 %v319, %v323
  %v328 = vadd.f32 %v308, %v324
  %v329 = vadd.f32 %v309, %v325
  %v330 = vadd.f32 %v310, %v326
  %v331 = vadd.f32 %v311, %v327
  %v332 = vld [vmem:[%s5] sm:$0x1]
  %v333 = vld [vmem:[%s6] sm:$0x1]
  %v334 = vadd.f32 %v328, %v329
  %v335 = vadd.f32 %v334, %v330
  %v336 = vadd.f32 %v335, %v331
  %v337 = vrot.slane %v336, 4
  %v338 = vadd.f32 %v336, %v337
  %v339 = vrot.slane %v338, 2
  %v340 = vadd.f32 %v338, %v339
  %v341 = vrot.slane %v340, 1
  %v342 = vadd.f32 %v340, %v341
  %343 = vrot.lane.b32.xlu0 %v342, 8
  %v344 = vpop.permute.xlu0 %343
  %v345 = vadd.f32 %v342, %v344
  %346 = vrot.lane.b32.xlu0 %v345, 16
  %v347 = vpop.permute.xlu0 %346
  %v348 = vadd.f32 %v345, %v347
  %349 = vrot.lane.b32.xlu0 %v348, 32
  %v350 = vpop.permute.xlu0 %349
  %v351 = vadd.f32 %v348, %v350
  %352 = vrot.lane.b32.xlu0 %v351, 64
  %v353 = vpop.permute.xlu0 %352
  %v354 = vadd.f32 %v351, %v353
  %v355 = vmul.f32 %v354, 0.001953125
  %v356 = vlaneseq
  %v357 = vshrl.u32 %v356, 7
  %v358 = vsub.s32 0, %v357
  %v359 = vrot.slane %v355, %v358
  %v360 = vsub.f32 %v328, %v359
  %v361 = vsub.f32 %v329, %v359
  %v362 = vsub.f32 %v330, %v359
  %v363 = vsub.f32 %v331, %v359
  %v364 = vmul.f32 %v360, %v360
  %v365 = vmul.f32 %v361, %v361
  %v366 = vmul.f32 %v362, %v362
  %v367 = vmul.f32 %v363, %v363
  %v368 = vadd.f32 %v364, %v365
  %v369 = vadd.f32 %v368, %v366
  %v370 = vadd.f32 %v369, %v367
  %v371 = vrot.slane %v370, 4
  %v372 = vadd.f32 %v370, %v371
  %v373 = vrot.slane %v372, 2
  %v374 = vadd.f32 %v372, %v373
  %v375 = vrot.slane %v374, 1
  %v376 = vadd.f32 %v374, %v375
  %377 = vrot.lane.b32.xlu0 %v376, 8
  %v378 = vpop.permute.xlu0 %377
  %v379 = vadd.f32 %v376, %v378
  %380 = vrot.lane.b32.xlu0 %v379, 16
  %v381 = vpop.permute.xlu0 %380
  %v382 = vadd.f32 %v379, %v381
  %383 = vrot.lane.b32.xlu0 %v382, 32
  %v384 = vpop.permute.xlu0 %383
  %v385 = vadd.f32 %v382, %v384
  %386 = vrot.lane.b32.xlu0 %v385, 64
  %v387 = vpop.permute.xlu0 %386
  %v388 = vadd.f32 %v385, %v387
  %v389 = vmul.f32 %v388, 0.001953125
  %v390 = vadd.f32 %v389, 1e-05
  %v391 = vrsqrt.pop %v390
  %v392 = vmul.f32 %v391, %v332
  %v393 = vlaneseq
  %v394 = vshrl.u32 %v393, 7
  %v395 = vsub.s32 0, %v394
  %v396 = vrot.slane %v392, %v395
  %v397 = vmul.f32 %v360, %v396
  %v398 = vmul.f32 %v361, %v396
  %v399 = vmul.f32 %v362, %v396
  %v400 = vmul.f32 %v363, %v396
  %v402 = vlaneseq
  %v403 = vshrl.u32 %v402, 7
  %v404 = vsub.s32 0, %v403
  %v405 = vrot.slane %v333, %v404
  %v407 = vadd.f32 %v397, %v405
  %v408 = vadd.f32 %v398, %v405
  %v409 = vadd.f32 %v399, %v405
  %v410 = vadd.f32 %v400, %v405
  %v411 = vmax.f32 %v407, 0.0
  %v412 = vmax.f32 %v408, 0.0
  %v413 = vmax.f32 %v409, 0.0
  %v414 = vmax.f32 %v410, 0.0
  %v415 = vmin.f32 %v411, 6.0
  %v416 = vmin.f32 %v412, 6.0
  %v417 = vmin.f32 %v413, 6.0
  %v418 = vmin.f32 %v414, 6.0
  %v419 = vld [vmem:[%s1] sm:$0xff]
  %v420 = vld [vmem:[%s1 + $0x8] sm:$0xff]
  %v421 = vld [vmem:[%s1 + $0x10] sm:$0xff]
  %v422 = vld [vmem:[%s1 + $0x18] sm:$0xff]
  %vm427 = vcmask 1046528
  %v428 = vrot.slane %v415, 1
  %v429 = vrot.slane %v416, 1
  %v430 = vsel %vm427, %v428, %v429
  %v431 = vrot.slane %v417, 1
  %v432 = vsel %vm427, %v429, %v431
  %v433 = vrot.slane %v418, 1
  %v434 = vsel %vm427, %v431, %v433
  %v439 = vsel %vm427, %v433, 0.0
  %441 = vset.pattern.permute.xlu0 0
  %442 = vperm.xlu0 %441, %v419
  %v443 = vpop.permute.xlu0 %442
  %446 = vset.pattern.permute.xlu0 0
  %447 = vperm.xlu0 %446, %v420
  %v448 = vpop.permute.xlu0 %447
  %451 = vset.pattern.permute.xlu0 0
  %452 = vperm.xlu0 %451, %v421
  %v453 = vpop.permute.xlu0 %452
  %456 = vset.pattern.permute.xlu0 0
  %457 = vperm.xlu0 %456, %v422
  %v458 = vpop.permute.xlu0 %457
  %v460 = vmul.f32 %v430, %v443
  %v461 = vmul.f32 %v432, %v448
  %v462 = vmul.f32 %v434, %v453
  %v463 = vmul.f32 %v439, %v458
  %vm464 = vcmask 1040384
  %v465 = vrot.slane %v415, 7
  %v466 = vrot.slane %v416, 7
  %v467 = vsel %vm464, %v465, %v466
  %v468 = vrot.slane %v417, 7
  %v469 = vsel %vm464, %v466, %v468
  %v470 = vrot.slane %v418, 7
  %v471 = vsel %vm464, %v468, %v470
  %v476 = vsel %vm464, 0.0, %v465
  %477 = vset.pattern.permute.xlu0 1
  %478 = vperm.xlu0 %477, %v419
  %v479 = vpop.permute.xlu0 %478
  %481 = vset.pattern.permute.xlu0 1
  %482 = vperm.xlu0 %481, %v420
  %v483 = vpop.permute.xlu0 %482
  %485 = vset.pattern.permute.xlu0 1
  %486 = vperm.xlu0 %485, %v421
  %v487 = vpop.permute.xlu0 %486
  %489 = vset.pattern.permute.xlu0 1
  %490 = vperm.xlu0 %489, %v422
  %v491 = vpop.permute.xlu0 %490
  %v493 = vmul.f32 %v476, %v479
  %v494 = vmul.f32 %v467, %v483
  %v495 = vmul.f32 %v469, %v487
  %v496 = vmul.f32 %v471, %v491
  %v497 = vld [vmem:[%s3] sm:$0xff]
  %v498 = vld [vmem:[%s3 + $0x8] sm:$0x1]
  %499 = vrot.lane.b32.xlu0 %v493, 8
  %v500 = vpop.permute.xlu0 %499
  %501 = vrot.lane.b32.xlu0 %v494, 8
  %v502 = vpop.permute.xlu0 %501
  %503 = vrot.lane.b32.xlu0 %v495, 8
  %v504 = vpop.permute.xlu0 %503
  %505 = vrot.lane.b32.xlu0 %v496, 8
  %v506 = vpop.permute.xlu0 %505
  %v507 = vlaneseq
  %v508 = vshrl.u32 %v507, 7
  %v509 = vsub.s32 0, %v508
  %v510 = vrot.slane %v497, %v509
  %v511 = vmul.f32 %v500, %v510
  %v512 = vmul.f32 %v502, %v510
  %v513 = vmul.f32 %v504, %v510
  %v514 = vmul.f32 %v506, %v510
  %v515 = vlaneseq
  %v516 = vshrl.u32 %v515, 7
  %v517 = vsub.s32 1, %v516
  %v518 = vrot.slane %v497, %v517
  %v519 = vmul.f32 %v493, %v518
  %v520 = vmul.f32 %v494, %v518
  %v521 = vmul.f32 %v495, %v518
  %v522 = vmul.f32 %v496, %v518
  %v523 = vadd.f32 %v511, %v519
  %v524 = vadd.f32 %v512, %v520
  %v525 = vadd.f32 %v513, %v521
  %v526 = vadd.f32 %v514, %v522
  %527 = vrot.lane.b32.xlu0 %v493, 120
  %v528 = vpop.permute.xlu0 %527
  %529 = vrot.lane.b32.xlu0 %v494, 120
  %v530 = vpop.permute.xlu0 %529
  %531 = vrot.lane.b32.xlu0 %v495, 120
  %v532 = vpop.permute.xlu0 %531
  %533 = vrot.lane.b32.xlu0 %v496, 120
  %v534 = vpop.permute.xlu0 %533
  %v535 = vlaneseq
  %v536 = vshrl.u32 %v535, 7
  %v537 = vsub.s32 2, %v536
  %v538 = vrot.slane %v497, %v537
  %v539 = vmul.f32 %v528, %v538
  %v540 = vmul.f32 %v530, %v538
  %v541 = vmul.f32 %v532, %v538
  %v542 = vmul.f32 %v534, %v538
  %v543 = vadd.f32 %v523, %v539
  %v544 = vadd.f32 %v524, %v540
  %v545 = vadd.f32 %v525, %v541
  %v546 = vadd.f32 %v526, %v542
  %547 = vrot.lane.b32.xlu0 %v415, 8
  %v548 = vpop.permute.xlu0 %547
  %549 = vrot.lane.b32.xlu0 %v416, 8
  %v550 = vpop.permute.xlu0 %549
  %551 = vrot.lane.b32.xlu0 %v417, 8
  %v552 = vpop.permute.xlu0 %551
  %553 = vrot.lane.b32.xlu0 %v418, 8
  %v554 = vpop.permute.xlu0 %553
  %v555 = vlaneseq
  %v556 = vshrl.u32 %v555, 7
  %v557 = vsub.s32 3, %v556
  %v558 = vrot.slane %v497, %v557
  %v559 = vmul.f32 %v548, %v558
  %v560 = vmul.f32 %v550, %v558
  %v561 = vmul.f32 %v552, %v558
  %v562 = vmul.f32 %v554, %v558
  %v563 = vadd.f32 %v543, %v559
  %v564 = vadd.f32 %v544, %v560
  %v565 = vadd.f32 %v545, %v561
  %v566 = vadd.f32 %v546, %v562
  %v567 = vlaneseq
  %v568 = vshrl.u32 %v567, 7
  %v569 = vsub.s32 4, %v568
  %v570 = vrot.slane %v497, %v569
  %v571 = vmul.f32 %v415, %v570
  %v572 = vmul.f32 %v416, %v570
  %v573 = vmul.f32 %v417, %v570
  %v574 = vmul.f32 %v418, %v570
  %v575 = vadd.f32 %v563, %v571
  %v576 = vadd.f32 %v564, %v572
  %v577 = vadd.f32 %v565, %v573
  %v578 = vadd.f32 %v566, %v574
  %579 = vrot.lane.b32.xlu0 %v415, 120
  %v580 = vpop.permute.xlu0 %579
  %581 = vrot.lane.b32.xlu0 %v416, 120
  %v582 = vpop.permute.xlu0 %581
  %583 = vrot.lane.b32.xlu0 %v417, 120
  %v584 = vpop.permute.xlu0 %583
  %585 = vrot.lane.b32.xlu0 %v418, 120
  %v586 = vpop.permute.xlu0 %585
  %v587 = vlaneseq
  %v588 = vshrl.u32 %v587, 7
  %v589 = vsub.s32 5, %v588
  %v590 = vrot.slane %v497, %v589
  %v591 = vmul.f32 %v580, %v590
  %v592 = vmul.f32 %v582, %v590
  %v593 = vmul.f32 %v584, %v590
  %v594 = vmul.f32 %v586, %v590
  %v595 = vadd.f32 %v575, %v591
  %v596 = vadd.f32 %v576, %v592
  %v597 = vadd.f32 %v577, %v593
  %v598 = vadd.f32 %v578, %v594
  %599 = vrot.lane.b32.xlu0 %v460, 8
  %v600 = vpop.permute.xlu0 %599
  %601 = vrot.lane.b32.xlu0 %v461, 8
  %v602 = vpop.permute.xlu0 %601
  %603 = vrot.lane.b32.xlu0 %v462, 8
  %v604 = vpop.permute.xlu0 %603
  %605 = vrot.lane.b32.xlu0 %v463, 8
  %v606 = vpop.permute.xlu0 %605
  %v607 = vlaneseq
  %v608 = vshrl.u32 %v607, 7
  %v609 = vsub.s32 6, %v608
  %v610 = vrot.slane %v497, %v609
  %v611 = vmul.f32 %v600, %v610
  %v612 = vmul.f32 %v602, %v610
  %v613 = vmul.f32 %v604, %v610
  %v614 = vmul.f32 %v606, %v610
  %v615 = vadd.f32 %v595, %v611
  %v616 = vadd.f32 %v596, %v612
  %v617 = vadd.f32 %v597, %v613
  %v618 = vadd.f32 %v598, %v614
  %v619 = vlaneseq
  %v620 = vshrl.u32 %v619, 7
  %v621 = vsub.s32 7, %v620
  %v622 = vrot.slane %v497, %v621
  %v623 = vmul.f32 %v460, %v622
  %v624 = vmul.f32 %v461, %v622
  %v625 = vmul.f32 %v462, %v622
  %v626 = vmul.f32 %v463, %v622
  %v627 = vadd.f32 %v615, %v623
  %v628 = vadd.f32 %v616, %v624
  %v629 = vadd.f32 %v617, %v625
  %v630 = vadd.f32 %v618, %v626
  %631 = vrot.lane.b32.xlu0 %v460, 120
  %v632 = vpop.permute.xlu0 %631
  %633 = vrot.lane.b32.xlu0 %v461, 120
  %v634 = vpop.permute.xlu0 %633
  %635 = vrot.lane.b32.xlu0 %v462, 120
  %v636 = vpop.permute.xlu0 %635
  %637 = vrot.lane.b32.xlu0 %v463, 120
  %v638 = vpop.permute.xlu0 %637
  %v639 = vlaneseq
  %v640 = vshrl.u32 %v639, 7
  %v641 = vsub.s32 0, %v640
  %v642 = vrot.slane %v498, %v641
  %v643 = vmul.f32 %v632, %v642
  %v644 = vmul.f32 %v634, %v642
  %v645 = vmul.f32 %v636, %v642
  %v646 = vmul.f32 %v638, %v642
  %v647 = vadd.f32 %v627, %v643
  %v648 = vadd.f32 %v628, %v644
  %v649 = vadd.f32 %v629, %v645
  %v650 = vadd.f32 %v630, %v646
  %v651 = vld [vmem:[%s7] sm:$0x1]
  %v652 = vld [vmem:[%s8] sm:$0x1]
  %v653 = vadd.f32 %v647, %v648
  %v654 = vadd.f32 %v653, %v649
  %v655 = vadd.f32 %v654, %v650
  %v656 = vrot.slane %v655, 4
  %v657 = vadd.f32 %v655, %v656
  %v658 = vrot.slane %v657, 2
  %v659 = vadd.f32 %v657, %v658
  %v660 = vrot.slane %v659, 1
  %v661 = vadd.f32 %v659, %v660
  %662 = vrot.lane.b32.xlu0 %v661, 8
  %v663 = vpop.permute.xlu0 %662
  %v664 = vadd.f32 %v661, %v663
  %665 = vrot.lane.b32.xlu0 %v664, 16
  %v666 = vpop.permute.xlu0 %665
  %v667 = vadd.f32 %v664, %v666
  %668 = vrot.lane.b32.xlu0 %v667, 32
  %v669 = vpop.permute.xlu0 %668
  %v670 = vadd.f32 %v667, %v669
  %671 = vrot.lane.b32.xlu0 %v670, 64
  %v672 = vpop.permute.xlu0 %671
  %v673 = vadd.f32 %v670, %v672
  %v674 = vmul.f32 %v673, 0.001953125
  %v675 = vlaneseq
  %v676 = vshrl.u32 %v675, 7
  %v677 = vsub.s32 0, %v676
  %v678 = vrot.slane %v674, %v677
  %v679 = vsub.f32 %v647, %v678
  %v680 = vsub.f32 %v648, %v678
  %v681 = vsub.f32 %v649, %v678
  %v682 = vsub.f32 %v650, %v678
  %v683 = vmul.f32 %v679, %v679
  %v684 = vmul.f32 %v680, %v680
  %v685 = vmul.f32 %v681, %v681
  %v686 = vmul.f32 %v682, %v682
  %v687 = vadd.f32 %v683, %v684
  %v688 = vadd.f32 %v687, %v685
  %v689 = vadd.f32 %v688, %v686
  %v690 = vrot.slane %v689, 4
  %v691 = vadd.f32 %v689, %v690
  %v692 = vrot.slane %v691, 2
  %v693 = vadd.f32 %v691, %v692
  %v694 = vrot.slane %v693, 1
  %v695 = vadd.f32 %v693, %v694
  %696 = vrot.lane.b32.xlu0 %v695, 8
  %v697 = vpop.permute.xlu0 %696
  %v698 = vadd.f32 %v695, %v697
  %699 = vrot.lane.b32.xlu0 %v698, 16
  %v700 = vpop.permute.xlu0 %699
  %v701 = vadd.f32 %v698, %v700
  %702 = vrot.lane.b32.xlu0 %v701, 32
  %v703 = vpop.permute.xlu0 %702
  %v704 = vadd.f32 %v701, %v703
  %705 = vrot.lane.b32.xlu0 %v704, 64
  %v706 = vpop.permute.xlu0 %705
  %v707 = vadd.f32 %v704, %v706
  %v708 = vmul.f32 %v707, 0.001953125
  %v709 = vadd.f32 %v708, 1e-05
  %v710 = vrsqrt.pop %v709
  %v711 = vmul.f32 %v710, %v651
  %v712 = vlaneseq
  %v713 = vshrl.u32 %v712, 7
  %v714 = vsub.s32 0, %v713
  %v715 = vrot.slane %v711, %v714
  %v716 = vmul.f32 %v679, %v715
  %v717 = vmul.f32 %v680, %v715
  %v718 = vmul.f32 %v681, %v715
  %v719 = vmul.f32 %v682, %v715
  %v721 = vlaneseq
  %v722 = vshrl.u32 %v721, 7
  %v723 = vsub.s32 0, %v722
  %v724 = vrot.slane %v652, %v723
  %v726 = vadd.f32 %v716, %v724
  %v727 = vadd.f32 %v717, %v724
  %v728 = vadd.f32 %v718, %v724
  %v729 = vadd.f32 %v719, %v724
  %v730 = vld [vmem:[%s4] sm:$0xff]
  %v731 = vld [vmem:[%s4 + $0x8] sm:$0x7f]
  %v732 = vlaneseq
  %v733 = vshrl.u32 %v732, 7
  %v734 = vsub.s32 7, %v733
  %v735 = vrot.slane %v730, %v734
  %v736 = vmul.f32 %v726, %v735
  %v737 = vmul.f32 %v727, %v735
  %v738 = vmul.f32 %v728, %v735
  %v739 = vmul.f32 %v729, %v735
  %740 = vrot.lane.b32.xlu0 %v726, 127
  %v741 = vpop.permute.xlu0 %740
  %742 = vrot.lane.b32.xlu0 %v727, 127
  %v743 = vpop.permute.xlu0 %742
  %744 = vrot.lane.b32.xlu0 %v728, 127
  %v745 = vpop.permute.xlu0 %744
  %746 = vrot.lane.b32.xlu0 %v729, 127
  %v747 = vpop.permute.xlu0 %746
  %v748 = vlaneseq
  %v749 = vshrl.u32 %v748, 7
  %v750 = vsub.s32 0, %v749
  %v751 = vrot.slane %v731, %v750
  %v752 = vmul.f32 %v741, %v751
  %v753 = vmul.f32 %v743, %v751
  %v754 = vmul.f32 %v745, %v751
  %v755 = vmul.f32 %v747, %v751
  %v756 = vadd.f32 %v736, %v752
  %v757 = vadd.f32 %v737, %v753
  %v758 = vadd.f32 %v738, %v754
  %v759 = vadd.f32 %v739, %v755
  %760 = vrot.lane.b32.xlu0 %v726, 1
  %v761 = vpop.permute.xlu0 %760
  %762 = vrot.lane.b32.xlu0 %v727, 1
  %v763 = vpop.permute.xlu0 %762
  %764 = vrot.lane.b32.xlu0 %v728, 1
  %v765 = vpop.permute.xlu0 %764
  %766 = vrot.lane.b32.xlu0 %v729, 1
  %v767 = vpop.permute.xlu0 %766
  %v768 = vlaneseq
  %v769 = vshrl.u32 %v768, 7
  %v770 = vsub.s32 6, %v769
  %v771 = vrot.slane %v730, %v770
  %v772 = vmul.f32 %v761, %v771
  %v773 = vmul.f32 %v763, %v771
  %v774 = vmul.f32 %v765, %v771
  %v775 = vmul.f32 %v767, %v771
  %v776 = vadd.f32 %v756, %v772
  %v777 = vadd.f32 %v757, %v773
  %v778 = vadd.f32 %v758, %v774
  %v779 = vadd.f32 %v759, %v775
  %780 = vrot.lane.b32.xlu0 %v726, 126
  %v781 = vpop.permute.xlu0 %780
  %782 = vrot.lane.b32.xlu0 %v727, 126
  %v783 = vpop.permute.xlu0 %782
  %784 = vrot.lane.b32.xlu0 %v728, 126
  %v785 = vpop.permute.xlu0 %784
  %786 = vrot.lane.b32.xlu0 %v729, 126
  %v787 = vpop.permute.xlu0 %786
  %v788 = vlaneseq
  %v789 = vshrl.u32 %v788, 7
  %v790 = vsub.s32 1, %v789
  %v791 = vrot.slane %v731, %v790
  %v792 = vmul.f32 %v781, %v791
  %v793 = vmul.f32 %v783, %v791
  %v794 = vmul.f32 %v785, %v791
  %v795 = vmul.f32 %v787, %v791
  %v796 = vadd.f32 %v776, %v792
  %v797 = vadd.f32 %v777, %v793
  %v798 = vadd.f32 %v778, %v794
  %v799 = vadd.f32 %v779, %v795
  %800 = vrot.lane.b32.xlu0 %v726, 2
  %v801 = vpop.permute.xlu0 %800
  %802 = vrot.lane.b32.xlu0 %v727, 2
  %v803 = vpop.permute.xlu0 %802
  %804 = vrot.lane.b32.xlu0 %v728, 2
  %v805 = vpop.permute.xlu0 %804
  %806 = vrot.lane.b32.xlu0 %v729, 2
  %v807 = vpop.permute.xlu0 %806
  %v808 = vlaneseq
  %v809 = vshrl.u32 %v808, 7
  %v810 = vsub.s32 5, %v809
  %v811 = vrot.slane %v730, %v810
  %v812 = vmul.f32 %v801, %v811
  %v813 = vmul.f32 %v803, %v811
  %v814 = vmul.f32 %v805, %v811
  %v815 = vmul.f32 %v807, %v811
  %v816 = vadd.f32 %v796, %v812
  %v817 = vadd.f32 %v797, %v813
  %v818 = vadd.f32 %v798, %v814
  %v819 = vadd.f32 %v799, %v815
  %820 = vrot.lane.b32.xlu0 %v726, 125
  %v821 = vpop.permute.xlu0 %820
  %822 = vrot.lane.b32.xlu0 %v727, 125
  %v823 = vpop.permute.xlu0 %822
  %824 = vrot.lane.b32.xlu0 %v728, 125
  %v825 = vpop.permute.xlu0 %824
  %826 = vrot.lane.b32.xlu0 %v729, 125
  %v827 = vpop.permute.xlu0 %826
  %v828 = vlaneseq
  %v829 = vshrl.u32 %v828, 7
  %v830 = vsub.s32 2, %v829
  %v831 = vrot.slane %v731, %v830
  %v832 = vmul.f32 %v821, %v831
  %v833 = vmul.f32 %v823, %v831
  %v834 = vmul.f32 %v825, %v831
  %v835 = vmul.f32 %v827, %v831
  %v836 = vadd.f32 %v816, %v832
  %v837 = vadd.f32 %v817, %v833
  %v838 = vadd.f32 %v818, %v834
  %v839 = vadd.f32 %v819, %v835
  %840 = vrot.lane.b32.xlu0 %v726, 3
  %v841 = vpop.permute.xlu0 %840
  %842 = vrot.lane.b32.xlu0 %v727, 3
  %v843 = vpop.permute.xlu0 %842
  %844 = vrot.lane.b32.xlu0 %v728, 3
  %v845 = vpop.permute.xlu0 %844
  %846 = vrot.lane.b32.xlu0 %v729, 3
  %v847 = vpop.permute.xlu0 %846
  %v848 = vlaneseq
  %v849 = vshrl.u32 %v848, 7
  %v850 = vsub.s32 4, %v849
  %v851 = vrot.slane %v730, %v850
  %v852 = vmul.f32 %v841, %v851
  %v853 = vmul.f32 %v843, %v851
  %v854 = vmul.f32 %v845, %v851
  %v855 = vmul.f32 %v847, %v851
  %v856 = vadd.f32 %v836, %v852
  %v857 = vadd.f32 %v837, %v853
  %v858 = vadd.f32 %v838, %v854
  %v859 = vadd.f32 %v839, %v855
  %860 = vrot.lane.b32.xlu0 %v726, 124
  %v861 = vpop.permute.xlu0 %860
  %862 = vrot.lane.b32.xlu0 %v727, 124
  %v863 = vpop.permute.xlu0 %862
  %864 = vrot.lane.b32.xlu0 %v728, 124
  %v865 = vpop.permute.xlu0 %864
  %866 = vrot.lane.b32.xlu0 %v729, 124
  %v867 = vpop.permute.xlu0 %866
  %v868 = vlaneseq
  %v869 = vshrl.u32 %v868, 7
  %v870 = vsub.s32 3, %v869
  %v871 = vrot.slane %v731, %v870
  %v872 = vmul.f32 %v861, %v871
  %v873 = vmul.f32 %v863, %v871
  %v874 = vmul.f32 %v865, %v871
  %v875 = vmul.f32 %v867, %v871
  %v876 = vadd.f32 %v856, %v872
  %v877 = vadd.f32 %v857, %v873
  %v878 = vadd.f32 %v858, %v874
  %v879 = vadd.f32 %v859, %v875
  %880 = vrot.lane.b32.xlu0 %v726, 4
  %v881 = vpop.permute.xlu0 %880
  %882 = vrot.lane.b32.xlu0 %v727, 4
  %v883 = vpop.permute.xlu0 %882
  %884 = vrot.lane.b32.xlu0 %v728, 4
  %v885 = vpop.permute.xlu0 %884
  %886 = vrot.lane.b32.xlu0 %v729, 4
  %v887 = vpop.permute.xlu0 %886
  %v888 = vlaneseq
  %v889 = vshrl.u32 %v888, 7
  %v890 = vsub.s32 3, %v889
  %v891 = vrot.slane %v730, %v890
  %v892 = vmul.f32 %v881, %v891
  %v893 = vmul.f32 %v883, %v891
  %v894 = vmul.f32 %v885, %v891
  %v895 = vmul.f32 %v887, %v891
  %v896 = vadd.f32 %v876, %v892
  %v897 = vadd.f32 %v877, %v893
  %v898 = vadd.f32 %v878, %v894
  %v899 = vadd.f32 %v879, %v895
  %900 = vrot.lane.b32.xlu0 %v726, 123
  %v901 = vpop.permute.xlu0 %900
  %902 = vrot.lane.b32.xlu0 %v727, 123
  %v903 = vpop.permute.xlu0 %902
  %904 = vrot.lane.b32.xlu0 %v728, 123
  %v905 = vpop.permute.xlu0 %904
  %906 = vrot.lane.b32.xlu0 %v729, 123
  %v907 = vpop.permute.xlu0 %906
  %v908 = vlaneseq
  %v909 = vshrl.u32 %v908, 7
  %v910 = vsub.s32 4, %v909
  %v911 = vrot.slane %v731, %v910
  %v912 = vmul.f32 %v901, %v911
  %v913 = vmul.f32 %v903, %v911
  %v914 = vmul.f32 %v905, %v911
  %v915 = vmul.f32 %v907, %v911
  %v916 = vadd.f32 %v896, %v912
  %v917 = vadd.f32 %v897, %v913
  %v918 = vadd.f32 %v898, %v914
  %v919 = vadd.f32 %v899, %v915
  %920 = vrot.lane.b32.xlu0 %v726, 5
  %v921 = vpop.permute.xlu0 %920
  %922 = vrot.lane.b32.xlu0 %v727, 5
  %v923 = vpop.permute.xlu0 %922
  %924 = vrot.lane.b32.xlu0 %v728, 5
  %v925 = vpop.permute.xlu0 %924
  %926 = vrot.lane.b32.xlu0 %v729, 5
  %v927 = vpop.permute.xlu0 %926
  %v928 = vlaneseq
  %v929 = vshrl.u32 %v928, 7
  %v930 = vsub.s32 2, %v929
  %v931 = vrot.slane %v730, %v930
  %v932 = vmul.f32 %v921, %v931
  %v933 = vmul.f32 %v923, %v931
  %v934 = vmul.f32 %v925, %v931
  %v935 = vmul.f32 %v927, %v931
  %v936 = vadd.f32 %v916, %v932
  %v937 = vadd.f32 %v917, %v933
  %v938 = vadd.f32 %v918, %v934
  %v939 = vadd.f32 %v919, %v935
  %940 = vrot.lane.b32.xlu0 %v726, 122
  %v941 = vpop.permute.xlu0 %940
  %942 = vrot.lane.b32.xlu0 %v727, 122
  %v943 = vpop.permute.xlu0 %942
  %944 = vrot.lane.b32.xlu0 %v728, 122
  %v945 = vpop.permute.xlu0 %944
  %946 = vrot.lane.b32.xlu0 %v729, 122
  %v947 = vpop.permute.xlu0 %946
  %v948 = vlaneseq
  %v949 = vshrl.u32 %v948, 7
  %v950 = vsub.s32 5, %v949
  %v951 = vrot.slane %v731, %v950
  %v952 = vmul.f32 %v941, %v951
  %v953 = vmul.f32 %v943, %v951
  %v954 = vmul.f32 %v945, %v951
  %v955 = vmul.f32 %v947, %v951
  %v956 = vadd.f32 %v936, %v952
  %v957 = vadd.f32 %v937, %v953
  %v958 = vadd.f32 %v938, %v954
  %v959 = vadd.f32 %v939, %v955
  %960 = vrot.lane.b32.xlu0 %v726, 6
  %v961 = vpop.permute.xlu0 %960
  %962 = vrot.lane.b32.xlu0 %v727, 6
  %v963 = vpop.permute.xlu0 %962
  %964 = vrot.lane.b32.xlu0 %v728, 6
  %v965 = vpop.permute.xlu0 %964
  %966 = vrot.lane.b32.xlu0 %v729, 6
  %v967 = vpop.permute.xlu0 %966
  %v968 = vlaneseq
  %v969 = vshrl.u32 %v968, 7
  %v970 = vsub.s32 1, %v969
  %v971 = vrot.slane %v730, %v970
  %v972 = vmul.f32 %v961, %v971
  %v973 = vmul.f32 %v963, %v971
  %v974 = vmul.f32 %v965, %v971
  %v975 = vmul.f32 %v967, %v971
  %v976 = vadd.f32 %v956, %v972
  %v977 = vadd.f32 %v957, %v973
  %v978 = vadd.f32 %v958, %v974
  %v979 = vadd.f32 %v959, %v975
  %980 = vrot.lane.b32.xlu0 %v726, 121
  %v981 = vpop.permute.xlu0 %980
  %982 = vrot.lane.b32.xlu0 %v727, 121
  %v983 = vpop.permute.xlu0 %982
  %984 = vrot.lane.b32.xlu0 %v728, 121
  %v985 = vpop.permute.xlu0 %984
  %986 = vrot.lane.b32.xlu0 %v729, 121
  %v987 = vpop.permute.xlu0 %986
  %v988 = vlaneseq
  %v989 = vshrl.u32 %v988, 7
  %v990 = vsub.s32 6, %v989
  %v991 = vrot.slane %v731, %v990
  %v992 = vmul.f32 %v981, %v991
  %v993 = vmul.f32 %v983, %v991
  %v994 = vmul.f32 %v985, %v991
  %v995 = vmul.f32 %v987, %v991
  %v996 = vadd.f32 %v976, %v992
  %v997 = vadd.f32 %v977, %v993
  %v998 = vadd.f32 %v978, %v994
  %v999 = vadd.f32 %v979, %v995
  %1000 = vrot.lane.b32.xlu0 %v726, 7
  %v1001 = vpop.permute.xlu0 %1000
  %1002 = vrot.lane.b32.xlu0 %v727, 7
  %v1003 = vpop.permute.xlu0 %1002
  %1004 = vrot.lane.b32.xlu0 %v728, 7
  %v1005 = vpop.permute.xlu0 %1004
  %1006 = vrot.lane.b32.xlu0 %v729, 7
  %v1007 = vpop.permute.xlu0 %1006
  %v1008 = vlaneseq
  %v1009 = vshrl.u32 %v1008, 7
  %v1010 = vsub.s32 0, %v1009
  %v1011 = vrot.slane %v730, %v1010
  %v1012 = vmul.f32 %v1001, %v1011
  %v1013 = vmul.f32 %v1003, %v1011
  %v1014 = vmul.f32 %v1005, %v1011
  %v1015 = vmul.f32 %v1007, %v1011
  %v1016 = vadd.f32 %v996, %v1012
  %v1017 = vadd.f32 %v997, %v1013
  %v1018 = vadd.f32 %v998, %v1014
  %v1019 = vadd.f32 %v999, %v1015
  %v1020 = vld [vmem:[%s9] sm:$0x1]
  %v1021 = vld [vmem:[%s10] sm:$0x1]
  %v1022 = vadd.f32 %v1016, %v1017
  %v1023 = vadd.f32 %v1022, %v1018
  %v1024 = vadd.f32 %v1023, %v1019
  %v1025 = vrot.slane %v1024, 4
  %v1026 = vadd.f32 %v1024, %v1025
  %v1027 = vrot.slane %v1026, 2
  %v1028 = vadd.f32 %v1026, %v1027
  %v1029 = vrot.slane %v1028, 1
  %v1030 = vadd.f32 %v1028, %v1029
  %1031 = vrot.lane.b32.xlu0 %v1030, 8
  %v1032 = vpop.permute.xlu0 %1031
  %v1033 = vadd.f32 %v1030, %v1032
  %1034 = vrot.lane.b32.xlu0 %v1033, 16
  %v1035 = vpop.permute.xlu0 %1034
  %v1036 = vadd.f32 %v1033, %v1035
  %1037 = vrot.lane.b32.xlu0 %v1036, 32
  %v1038 = vpop.permute.xlu0 %1037
  %v1039 = vadd.f32 %v1036, %v1038
  %1040 = vrot.lane.b32.xlu0 %v1039, 64
  %v1041 = vpop.permute.xlu0 %1040
  %v1042 = vadd.f32 %v1039, %v1041
  %v1043 = vmul.f32 %v1042, 0.001953125
  %v1044 = vlaneseq
  %v1045 = vshrl.u32 %v1044, 7
  %v1046 = vsub.s32 0, %v1045
  %v1047 = vrot.slane %v1043, %v1046
  %v1048 = vsub.f32 %v1016, %v1047
  %v1049 = vsub.f32 %v1017, %v1047
  %v1050 = vsub.f32 %v1018, %v1047
  %v1051 = vsub.f32 %v1019, %v1047
  %v1052 = vmul.f32 %v1048, %v1048
  %v1053 = vmul.f32 %v1049, %v1049
  %v1054 = vmul.f32 %v1050, %v1050
  %v1055 = vmul.f32 %v1051, %v1051
  %v1056 = vadd.f32 %v1052, %v1053
  %v1057 = vadd.f32 %v1056, %v1054
  %v1058 = vadd.f32 %v1057, %v1055
  %v1059 = vrot.slane %v1058, 4
  %v1060 = vadd.f32 %v1058, %v1059
  %v1061 = vrot.slane %v1060, 2
  %v1062 = vadd.f32 %v1060, %v1061
  %v1063 = vrot.slane %v1062, 1
  %v1064 = vadd.f32 %v1062, %v1063
  %1065 = vrot.lane.b32.xlu0 %v1064, 8
  %v1066 = vpop.permute.xlu0 %1065
  %v1067 = vadd.f32 %v1064, %v1066
  %1068 = vrot.lane.b32.xlu0 %v1067, 16
  %v1069 = vpop.permute.xlu0 %1068
  %v1070 = vadd.f32 %v1067, %v1069
  %1071 = vrot.lane.b32.xlu0 %v1070, 32
  %v1072 = vpop.permute.xlu0 %1071
  %v1073 = vadd.f32 %v1070, %v1072
  %1074 = vrot.lane.b32.xlu0 %v1073, 64
  %v1075 = vpop.permute.xlu0 %1074
  %v1076 = vadd.f32 %v1073, %v1075
  %v1077 = vmul.f32 %v1076, 0.001953125
  %v1078 = vadd.f32 %v1077, 1e-05
  %v1079 = vrsqrt.pop %v1078
  %v1080 = vmul.f32 %v1079, %v1020
  %v1081 = vlaneseq
  %v1082 = vshrl.u32 %v1081, 7
  %v1083 = vsub.s32 0, %v1082
  %v1084 = vrot.slane %v1080, %v1083
  %v1085 = vmul.f32 %v1048, %v1084
  %v1086 = vmul.f32 %v1049, %v1084
  %v1087 = vmul.f32 %v1050, %v1084
  %v1088 = vmul.f32 %v1051, %v1084
  %v1090 = vlaneseq
  %v1091 = vshrl.u32 %v1090, 7
  %v1092 = vsub.s32 0, %v1091
  %v1093 = vrot.slane %v1021, %v1092
  %v1095 = vadd.f32 %v1085, %v1093
  %v1096 = vadd.f32 %v1086, %v1093
  %v1097 = vadd.f32 %v1087, %v1093
  %v1098 = vadd.f32 %v1088, %v1093
  %v1099 = vmax.f32 %v1095, 0.0
  %v1100 = vmax.f32 %v1096, 0.0
  %v1101 = vmax.f32 %v1097, 0.0
  %v1102 = vmax.f32 %v1098, 0.0
  %v1103 = vmin.f32 %v1099, 6.0
  %v1104 = vmin.f32 %v1100, 6.0
  %v1105 = vmin.f32 %v1101, 6.0
  %v1106 = vmin.f32 %v1102, 6.0
  %1107 = vst [vmem:[%s11] sm:$0xff] %v1103
  %1108 = vst [vmem:[%s11 + $0x8] sm:$0xff] %v1104
  %1109 = vst [vmem:[%s11 + $0x10] sm:$0xff] %v1105
  %1110 = vst [vmem:[%s11 + $0x18] sm:$0xff] %v1106
  // Predicated region
  $region46: #{shuffle_unit_forward.1} parent=0 // pred_check
    _
  $region47: #{shuffle_unit_forward.1} parent=0 // pred_check_branch
    %1112 = sbr.rel (0) target = $region49
  $region48: #{shuffle_unit_forward.1} parent=0 // pred_region
    _
  $region49: #{shuffle_unit_forward.1} parent=0 // pred_fallthru
    _
  // Predicated region
  $region50: #{shuffle_unit_forward.1} parent=0 // pred_check
    _
  $region51: #{shuffle_unit_forward.1} parent=0 // pred_check_branch
    %1114 = sbr.rel (0) target = $region53
  $region52: #{shuffle_unit_forward.1} parent=0 // pred_region
    _
  $region53: #{shuffle_unit_forward.1} parent=0 // pred_fallthru
    _

</llo_original>
